<compile_context>
chip_gen: v5e
topology: v5e:2x2
jax: 0.10.0
libtpu: 0.0.40
codegen_flags: <defaults>
</compile_context>

<pallas_src>
import jax
import jax.numpy as jnp
from jax.experimental import pallas as pl
from jax.experimental.pallas import tpu as pltpu

_LANE = 128
_SUBLANE = 8


def _round_up(x, m):
    return ((x + m - 1) // m) * m


def _vmem_budget_bytes():
    """~80% of this chip's per-core VMEM; conservative fallback = v7x 64 MiB."""
    cap = None
    try:
        info = pltpu.get_tpu_info()
        cap = getattr(info, "vmem_capacity_bytes", None)
    except Exception:
        cap = None
    if not cap or cap <= 0:
        cap = 64 * 1024 * 1024
    return int(cap * 0.8)


def _glu_ff_kernel(x_ref, w1a_ref, w1g_ref, b1a_ref, b1g_ref, w2_ref, b2_ref,
                   o_ref, acc_ref):
    """Grid = (row_tiles, inner_chunks); acc_ref accumulates y_chunk @ W2_chunk."""
    k = pl.program_id(1)

    @pl.when(k == 0)
    def _init():
        acc_ref[...] = jnp.zeros_like(acc_ref)

    x = x_ref[...]                                        # (tm, dim), MXU dtype
    # GLU projection for this inner chunk: two lane-aligned matmuls, f32 accum.
    a = jnp.dot(x, w1a_ref[...], preferred_element_type=jnp.float32)
    a = a + b1a_ref[...].astype(jnp.float32)
    g = jnp.dot(x, w1g_ref[...], preferred_element_type=jnp.float32)
    g = g + b1g_ref[...].astype(jnp.float32)

    # SiLU gate in f32 (EUP sigmoid; v5e has no bf16 VPU/EUP).
    y = a * (g * jax.nn.sigmoid(g))

    # Output projection for this chunk, accumulated into the f32 scratch.
    y = y.astype(w2_ref.dtype)
    acc_ref[...] += jnp.dot(y, w2_ref[...], preferred_element_type=jnp.float32)

    @pl.when(k == pl.num_programs(1) - 1)
    def _finalize():
        o_ref[...] = (acc_ref[...] + b2_ref[...].astype(jnp.float32)).astype(o_ref.dtype)


def prepare_glu_ff_params(w1, b1, w2, b2, *, mxu_dtype=jnp.bfloat16, tile_inner=None):
    """One-time weight prep (call at model init, NOT per forward step).

    w1: [dim, 2*inner]  (pre-transposed from PyTorch's [out, in] layout)
    b1: [2*inner]
    w2: [inner, dim_out]
    b2: [dim_out]
    """
    dim, two_inner = w1.shape
    inner = two_inner // 2
    dim_out = w2.shape[1]

    # Lane-dense output: pad dim_out to a multiple of 128 -> unmasked vst.
    # TODO(synk): for tiny dim_out (e.g. 32) this 4x-pads output bytes; batching
    # several FF blocks along the lane axis would avoid it.
    dim_out_p = _round_up(max(dim_out, _LANE), _LANE)

    # Inner-chunk size: multiple of 128; keep a double-buffered weight chunk
    # (W1a + W1g + W2 slices) well under ~1/4 of the VMEM budget so the x/out
    # buffers, f32 accumulator and a/g/y intermediates still fit.
    budget = _vmem_budget_bytes()
    w_bytes = jnp.dtype(mxu_dtype).itemsize
    if tile_inner is None:
        tile_inner = min(_round_up(inner, _LANE), 1024)
        while (tile_inner > _LANE and
               2 * (2 * dim + dim_out_p) * tile_inner * w_bytes > budget // 4):
            tile_inner //= 2
    tile_inner = max(_LANE, _round_up(tile_inner, _LANE))
    inner_p = _round_up(inner, tile_inner)

    # Split the fused GLU projection so the kernel never slices the lane axis,
    # zero-pad, and cast the MXU operands to the fast matmul dtype once.
    w1a = jnp.pad(w1[:, :inner], ((0, 0), (0, inner_p - inner))).astype(mxu_dtype)
    w1g = jnp.pad(w1[:, inner:], ((0, 0), (0, inner_p - inner))).astype(mxu_dtype)
    b1a = jnp.pad(b1[:inner], (0, inner_p - inner)).reshape(1, inner_p)
    b1g = jnp.pad(b1[inner:], (0, inner_p - inner)).reshape(1, inner_p)
    w2p = jnp.pad(w2, ((0, inner_p - inner), (0, dim_out_p - dim_out))).astype(mxu_dtype)
    b2p = jnp.pad(b2, (0, dim_out_p - dim_out)).reshape(1, dim_out_p)

    return dict(w1a=w1a, w1g=w1g, b1a=b1a, b1g=b1g, w2=w2p, b2=b2p,
                dim=dim, inner=inner, inner_p=inner_p,
                dim_out=dim_out, dim_out_p=dim_out_p,
                tile_inner=tile_inner, mxu_dtype=mxu_dtype)


def glu_feed_forward_pallas(x, params, *, tile_m=None):
    """out = (a * SiLU(g)) @ W2 + b2  with  [a|g] = x @ W1 + b1.   x: [B, T, dim]."""
    B, T, dim = x.shape
    assert dim == params["dim"], "x feature dim does not match prepared weights"
    M = B * T
    inner_p = params["inner_p"]
    tile_inner = params["tile_inner"]
    dim_out = params["dim_out"]
    dim_out_p = params["dim_out_p"]
    mxu_dtype = params["mxu_dtype"]
    out_dtype = x.dtype

    budget = _vmem_budget_bytes()
    n_k = inner_p // tile_inner

    # ---- row tiling ---------------------------------------------------------
    if tile_m is None:
        tile_m = 512 if budget >= 80 * 1024 * 1024 else 256   # v5e/v6e vs v7x
    tile_m = min(tile_m, _round_up(M, _SUBLANE))
    if M > _SUBLANE:
        # Guarantee >= 2 row tiles so the 'parallel' axis can use both v7x TCs.
        tile_m = min(tile_m, _round_up((M + 1) // 2, _SUBLANE))
    tile_m = max(_SUBLANE, _round_up(tile_m, _SUBLANE))

    m_bytes = jnp.dtype(mxu_dtype).itemsize
    o_bytes = jnp.dtype(out_dtype).itemsize

    def vmem_estimate(tm):
        wk = (2 if n_k > 1 else 1) * (2 * dim + dim_out_p + 2) * tile_inner * m_bytes
        return (2 * tm * dim * m_bytes            # x double buffer
                + wk                              # weight-chunk buffers
                + 2 * tm * dim_out_p * o_bytes    # out double buffer
                + tm * dim_out_p * 4              # f32 accumulator scratch
                + 3 * tm * tile_inner * 4         # a / g / y f32 intermediates
                + dim_out_p * 4)                  # b2

    while tile_m > _SUBLANE and vmem_estimate(tile_m) > budget:
        tile_m = max(_SUBLANE, _round_up(tile_m // 2, _SUBLANE))

    M_pad = _round_up(M, tile_m)
    grid = (M_pad // tile_m, n_k)

    # Cast x once to the MXU dtype (also halves the input DMA when bf16) and
    # zero-pad the row axis so any M is handled without masking.
    x2d = x.reshape(M, dim).astype(mxu_dtype)
    if M_pad != M:
        x2d = jnp.pad(x2d, ((0, M_pad - M), (0, 0)))

    args = (x2d, params["w1a"], params["w1g"], params["b1a"], params["b1g"],
            params["w2"], params["b2"])

    n_row_tiles = M_pad // tile_m
    weight_reads = n_row_tiles if n_k > 1 else 1   # weights re-streamed per row tile
    bytes_accessed = (
        int(x2d.size) * x2d.dtype.itemsize
        + weight_reads * sum(int(a.size) * a.dtype.itemsize for a in args[1:])
        + M_pad * dim_out_p * o_bytes)
    cost = pl.CostEstimate(
        flops=2 * M_pad * dim * 2 * inner_p + 2 * M_pad * inner_p * dim_out_p,
        transcendentals=M_pad * inner_p,
        bytes_accessed=int(bytes_accessed),
    )

    def build(single_buffer_constants):
        def wspec(shape, index_map, constant_index):
            if constant_index and single_buffer_constants:
                # Constant block index: a second pipeline buffer is pure VMEM waste.
                return pl.BlockSpec(shape, index_map, pipeline_mode=pl.Buffered(1))
            return pl.BlockSpec(shape, index_map)

        resident = n_k == 1   # weight block index constant over the whole grid
        in_specs = [
            pl.BlockSpec((tile_m, dim), lambda i, k: (i, 0)),                    # x rows
            wspec((dim, tile_inner), lambda i, k: (0, k), resident),             # W1_a
            wspec((dim, tile_inner), lambda i, k: (0, k), resident),             # W1_gate
            wspec((1, tile_inner), lambda i, k: (0, k), resident),               # b1_a
            wspec((1, tile_inner), lambda i, k: (0, k), resident),               # b1_gate
            wspec((tile_inner, dim_out_p), lambda i, k: (k, 0), resident),       # W2
            wspec((1, dim_out_p), lambda i, k: (0, 0), True),                    # b2
        ]
        return pl.pallas_call(
            _glu_ff_kernel,
            out_shape=jax.ShapeDtypeStruct((M_pad, dim_out_p), out_dtype),
            grid_spec=pltpu.PrefetchScalarGridSpec(
                num_scalar_prefetch=0,
                grid=grid,
                in_specs=in_specs,
                out_specs=pl.BlockSpec((tile_m, dim_out_p), lambda i, k: (i, 0)),
                scratch_shapes=[pltpu.VMEM((tile_m, dim_out_p), jnp.float32)],
            ),
            compiler_params=pltpu.CompilerParams(
                dimension_semantics=("parallel", "arbitrary"),
                vmem_limit_bytes=budget,
            ),
            cost_estimate=cost,
        )

    try:
        out2d = build(True)(*args)
    except Exception:
        # Some JAX versions reject pipeline_mode=pl.Buffered(1); retry with the
        # default (double-buffered) pipelining. Correctness is unaffected.
        out2d = build(False)(*args)

    return out2d[:M, :dim_out].reshape(B, T, dim_out)


def _reference(x, w1, b1, w2, b2, mxu_dtype):
    """Pure-JAX reference mirroring the kernel's dtype handling."""
    f32 = jnp.float32
    xf = x.astype(mxu_dtype).astype(f32)
    w1f = w1.astype(mxu_dtype).astype(f32)
    w2f = w2.astype(mxu_dtype).astype(f32)
    h = jnp.einsum("btd,de->bte", xf, w1f) + b1.astype(f32)
    inner = h.shape[-1] // 2
    a, g = h[..., :inner], h[..., inner:]
    y = a * (g * jax.nn.sigmoid(g))
    y = y.astype(mxu_dtype).astype(f32)
    out = jnp.einsum("bti,io->bto", y, w2f) + b2.astype(f32)
    return out.astype(x.dtype)


if __name__ == "__main__":
    # Small config consistent with the module's FF block: dim=32, mult=4.
    dim = 32
    mult = 4
    inner_dim = dim * mult          # 128
    dim_out = dim
    B, T = 2, 8

    key = jax.random.PRNGKey(0)
    kx, kw1, kb1, kw2, kb2 = jax.random.split(key, 5)

    x = jax.random.normal(kx, (B, T, dim), dtype=jnp.float32)

    # GLU proj = nn.Linear(dim, 2*inner_dim); PyTorch stores weight [out, in],
    # pre-transposed here to [in, out]. Deterministic uniform init.
    bound1 = 1.0 / (dim ** 0.5)
    w1 = jax.random.uniform(kw1, (dim, 2 * inner_dim), minval=-bound1, maxval=bound1,
                            dtype=jnp.float32)
    b1 = jax.random.uniform(kb1, (2 * inner_dim,), minval=-bound1, maxval=bound1,
                            dtype=jnp.float32)

    # linear_out = nn.Linear(inner_dim, dim_out) with zero_init_output=True.
    w2 = jnp.zeros((inner_dim, dim_out), dtype=jnp.float32)
    b2 = jnp.zeros((dim_out,), dtype=jnp.float32)

    # --- exact-f32 MXU path vs. the f32 reference (tight tolerance) ----------
    params_f32 = prepare_glu_ff_params(w1, b1, w2, b2, mxu_dtype=jnp.float32)
    out = jax.block_until_ready(glu_feed_forward_pallas(x, params_f32))
    ref = _reference(x, w1, b1, w2, b2, jnp.float32)
    assert out.shape == (B, T, dim_out)
    assert jnp.allclose(out, ref, atol=1e-5, rtol=1e-5)

    # --- fast bf16-MXU path with nonzero W2/b2 (as after training updates) ---
    bound2 = 1.0 / (inner_dim ** 0.5)
    w2_nz = jax.random.uniform(kw2, (inner_dim, dim_out), minval=-bound2, maxval=bound2,
                               dtype=jnp.float32)
    b2_nz = jax.random.uniform(kb2, (dim_out,), minval=-bound2, maxval=bound2,
                               dtype=jnp.float32)
    params_bf16 = prepare_glu_ff_params(w1, b1, w2_nz, b2_nz)   # default bf16 MXU
    out2 = jax.block_until_ready(glu_feed_forward_pallas(x, params_bf16))
    ref2 = _reference(x, w1, b1, w2_nz, b2_nz, jnp.bfloat16)
    assert jnp.allclose(out2, ref2, atol=1e-2, rtol=1e-2)

    print("KERNEL_OK")
</pallas_src>

<mosaic_0001>
module attributes {stable_mosaic.version = 11 : i64} {
  func.func @_glu_ff_kernel(%arg0: i32, %arg1: i32, %arg2: memref<8x32xf32, #tpu.memory_space<vmem>>, %arg3: memref<32x128xf32, #tpu.memory_space<vmem>>, %arg4: memref<32x128xf32, #tpu.memory_space<vmem>>, %arg5: memref<1x128xf32, #tpu.memory_space<vmem>>, %arg6: memref<1x128xf32, #tpu.memory_space<vmem>>, %arg7: memref<128x128xf32, #tpu.memory_space<vmem>>, %arg8: memref<1x128xf32, #tpu.memory_space<vmem>>, %arg9: memref<8x128xf32, #tpu.memory_space<vmem>>, %arg10: memref<8x128xf32, #tpu.memory_space<vmem>>) attributes {dimension_semantics = [#tpu.dimension_semantics<parallel>, #tpu.dimension_semantics<arbitrary>], iteration_bounds = array<i64: 2, 1>, scalar_prefetch = 0 : i64, scratch_operands = 1 : i64, tpu.core_type = #tpu.core_type<tc>, window_params = [{transform_indices = @transform_0, window_bounds = array<i64: 8, 32>}, {pipeline_mode = #tpu.pipeline_mode<synchronous>, transform_indices = @transform_1, window_bounds = array<i64: 32, 128>}, {pipeline_mode = #tpu.pipeline_mode<synchronous>, transform_indices = @transform_2, window_bounds = array<i64: 32, 128>}, {pipeline_mode = #tpu.pipeline_mode<synchronous>, transform_indices = @transform_3, window_bounds = array<i64: 1, 128>}, {pipeline_mode = #tpu.pipeline_mode<synchronous>, transform_indices = @transform_4, window_bounds = array<i64: 1, 128>}, {pipeline_mode = #tpu.pipeline_mode<synchronous>, transform_indices = @transform_5, window_bounds = array<i64: 128, 128>}, {pipeline_mode = #tpu.pipeline_mode<synchronous>, transform_indices = @transform_6, window_bounds = array<i64: 1, 128>}, {transform_indices = @transform_7, window_bounds = array<i64: 8, 128>}]} {
    %c0_i32 = arith.constant 0 : i32
    %0 = arith.cmpi eq, %arg1, %c0_i32 : i32
    %1 = arith.extui %0 : i1 to i32
    %c0_i32_0 = arith.constant 0 : i32
    %2 = arith.cmpi ne, %1, %c0_i32_0 : i32
    scf.if %2 {
      %cst_21 = arith.constant 0.000000e+00 : f32
      %29 = vector.broadcast %cst_21 : f32 to vector<8x128xf32>
      %c0_22 = arith.constant 0 : index
      %c0_23 = arith.constant 0 : index
      %30 = vector.load %arg10[%c0_22, %c0_23] : memref<8x128xf32, #tpu.memory_space<vmem>>, vector<8x128xf32>
      tpu.vector_store %arg10[%c0_22, %c0_23], %29 {strides = array<i32>} : memref<8x128xf32, #tpu.memory_space<vmem>>, vector<8x128xf32>,
    } else {
    }
    %c0 = arith.constant 0 : index
    %c0_1 = arith.constant 0 : index
    %3 = vector.load %arg2[%c0, %c0_1] : memref<8x32xf32, #tpu.memory_space<vmem>>, vector<8x32xf32>
    %c0_2 = arith.constant 0 : index
    %c0_3 = arith.constant 0 : index
    %4 = vector.load %arg3[%c0_2, %c0_3] : memref<32x128xf32, #tpu.memory_space<vmem>>, vector<32x128xf32>
    %cst = arith.constant dense<0.000000e+00> : vector<8x128xf32>
    %5 = tpu.matmul %3, %4, %cst {dimension_numbers = #tpu.dot_dimension_numbers<[1], [0], [0], [1], [0, 0, 1, 1], [], []>} : vector<8x32xf32>, vector<32x128xf32>, vector<8x128xf32> -> vector<8x128xf32>
    %c0_4 = arith.constant 0 : index
    %c0_5 = arith.constant 0 : index
    %6 = vector.load %arg5[%c0_4, %c0_5] : memref<1x128xf32, #tpu.memory_space<vmem>>, vector<1x128xf32>
    %7 = vector.broadcast %6 : vector<1x128xf32> to vector<8x128xf32>
    %8 = arith.addf %5, %7 : vector<8x128xf32>
    %c0_6 = arith.constant 0 : index
    %c0_7 = arith.constant 0 : index
    %9 = vector.load %arg4[%c0_6, %c0_7] : memref<32x128xf32, #tpu.memory_space<vmem>>, vector<32x128xf32>
    %cst_8 = arith.constant dense<0.000000e+00> : vector<8x128xf32>
    %10 = tpu.matmul %3, %9, %cst_8 {dimension_numbers = #tpu.dot_dimension_numbers<[1], [0], [0], [1], [0, 0, 1, 1], [], []>} : vector<8x32xf32>, vector<32x128xf32>, vector<8x128xf32> -> vector<8x128xf32>
    %c0_9 = arith.constant 0 : index
    %c0_10 = arith.constant 0 : index
    %11 = vector.load %arg6[%c0_9, %c0_10] : memref<1x128xf32, #tpu.memory_space<vmem>>, vector<1x128xf32>
    %12 = vector.broadcast %11 : vector<1x128xf32> to vector<8x128xf32>
    %13 = arith.addf %10, %12 : vector<8x128xf32>
    %14 = arith.negf %13 : vector<8x128xf32>
    %15 = math.exp %14 : vector<8x128xf32>
    %cst_11 = arith.constant 1.000000e+00 : f32
    %16 = vector.broadcast %cst_11 : f32 to vector<8x128xf32>
    %17 = arith.addf %16, %15 : vector<8x128xf32>
    %18 = arith.divf %16, %17 : vector<8x128xf32>
    %19 = arith.mulf %13, %18 : vector<8x128xf32>
    %20 = arith.mulf %8, %19 : vector<8x128xf32>
    %c0_12 = arith.constant 0 : index
    %c0_13 = arith.constant 0 : index
    %21 = vector.load %arg10[%c0_12, %c0_13] : memref<8x128xf32, #tpu.memory_space<vmem>>, vector<8x128xf32>
    %c0_14 = arith.constant 0 : index
    %c0_15 = arith.constant 0 : index
    %22 = vector.load %arg7[%c0_14, %c0_15] : memref<128x128xf32, #tpu.memory_space<vmem>>, vector<128x128xf32>
    %cst_16 = arith.constant dense<0.000000e+00> : vector<8x128xf32>
    %23 = tpu.matmul %20, %22, %cst_16 {dimension_numbers = #tpu.dot_dimension_numbers<[1], [0], [0], [1], [0, 0, 1, 1], [], []>} : vector<8x128xf32>, vector<128x128xf32>, vector<8x128xf32> -> vector<8x128xf32>
    %24 = arith.addf %21, %23 : vector<8x128xf32>
    %c0_17 = arith.constant 0 : index
    %c0_18 = arith.constant 0 : index
    %25 = vector.load %arg10[%c0_17, %c0_18] : memref<8x128xf32, #tpu.memory_space<vmem>>, vector<8x128xf32>
    tpu.vector_store %arg10[%c0_17, %c0_18], %24 {strides = array<i32>} : memref<8x128xf32, #tpu.memory_space<vmem>>, vector<8x128xf32>,
    %c0_i32_19 = arith.constant 0 : i32
    %26 = arith.cmpi eq, %arg1, %c0_i32_19 : i32
    %27 = arith.extui %26 : i1 to i32
    %c0_i32_20 = arith.constant 0 : i32
    %28 = arith.cmpi ne, %27, %c0_i32_20 : i32
    scf.if %28 {
      %c0_21 = arith.constant 0 : index
      %c0_22 = arith.constant 0 : index
      %29 = vector.load %arg10[%c0_21, %c0_22] : memref<8x128xf32, #tpu.memory_space<vmem>>, vector<8x128xf32>
      %c0_23 = arith.constant 0 : index
      %c0_24 = arith.constant 0 : index
      %30 = vector.load %arg8[%c0_23, %c0_24] : memref<1x128xf32, #tpu.memory_space<vmem>>, vector<1x128xf32>
      %31 = vector.broadcast %30 : vector<1x128xf32> to vector<8x128xf32>
      %32 = arith.addf %29, %31 : vector<8x128xf32>
      %c0_25 = arith.constant 0 : index
      %c0_26 = arith.constant 0 : index
      %33 = vector.load %arg9[%c0_25, %c0_26] : memref<8x128xf32, #tpu.memory_space<vmem>>, vector<8x128xf32>
      tpu.vector_store %arg9[%c0_25, %c0_26], %32 {strides = array<i32>} : memref<8x128xf32, #tpu.memory_space<vmem>>, vector<8x128xf32>,
    } else {
    }
    return
  }
  func.func @transform_0(%arg0: i32, %arg1: i32) -> (i32, i32) {
    %c0_i32 = arith.constant 0 : i32
    %c0_i32_0 = arith.constant 0 : i32
    return %arg0, %c0_i32 : i32, i32
  }
  func.func @transform_1(%arg0: i32, %arg1: i32) -> (i32, i32) {
    %c0_i32 = arith.constant 0 : i32
    %c0_i32_0 = arith.constant 0 : i32
    return %c0_i32, %arg1 : i32, i32
  }
  func.func @transform_2(%arg0: i32, %arg1: i32) -> (i32, i32) {
    %c0_i32 = arith.constant 0 : i32
    %c0_i32_0 = arith.constant 0 : i32
    return %c0_i32, %arg1 : i32, i32
  }
  func.func @transform_3(%arg0: i32, %arg1: i32) -> (i32, i32) {
    %c0_i32 = arith.constant 0 : i32
    %c0_i32_0 = arith.constant 0 : i32
    return %c0_i32, %arg1 : i32, i32
  }
  func.func @transform_4(%arg0: i32, %arg1: i32) -> (i32, i32) {
    %c0_i32 = arith.constant 0 : i32
    %c0_i32_0 = arith.constant 0 : i32
    return %c0_i32, %arg1 : i32, i32
  }
  func.func @transform_5(%arg0: i32, %arg1: i32) -> (i32, i32) {
    %c0_i32 = arith.constant 0 : i32
    %c0_i32_0 = arith.constant 0 : i32
    return %arg1, %c0_i32 : i32, i32
  }
  func.func @transform_6(%arg0: i32, %arg1: i32) -> (i32, i32) {
    %c0_i32 = arith.constant 0 : i32
    %c0_i32_0 = arith.constant 0 : i32
    %c0_i32_1 = arith.constant 0 : i32
    return %c0_i32, %c0_i32_0 : i32, i32
  }
  func.func @transform_7(%arg0: i32, %arg1: i32) -> (i32, i32) {
    %c0_i32 = arith.constant 0 : i32
    %c0_i32_0 = arith.constant 0 : i32
    return %arg0, %c0_i32 : i32, i32
  }
}

module attributes {stable_mosaic.version = 11 : i64} {
  func.func @_glu_ff_kernel(%arg0: i32, %arg1: i32, %arg2: memref<8x32xf32, #tpu.memory_space<vmem>>, %arg3: memref<32x128xf32, #tpu.memory_space<vmem>>, %arg4: memref<32x128xf32, #tpu.memory_space<vmem>>, %arg5: memref<1x128xf32, #tpu.memory_space<vmem>>, %arg6: memref<1x128xf32, #tpu.memory_space<vmem>>, %arg7: memref<128x128xf32, #tpu.memory_space<vmem>>, %arg8: memref<1x128xf32, #tpu.memory_space<vmem>>, %arg9: memref<8x128xf32, #tpu.memory_space<vmem>>, %arg10: memref<8x128xf32, #tpu.memory_space<vmem>>) attributes {dimension_semantics = [#tpu.dimension_semantics<parallel>, #tpu.dimension_semantics<arbitrary>], iteration_bounds = array<i64: 2, 1>, scalar_prefetch = 0 : i64, scratch_operands = 1 : i64, tpu.core_type = #tpu.core_type<tc>, window_params = [{transform_indices = @transform_0, window_bounds = array<i64: 8, 32>}, {transform_indices = @transform_1, window_bounds = array<i64: 32, 128>}, {transform_indices = @transform_2, window_bounds = array<i64: 32, 128>}, {transform_indices = @transform_3, window_bounds = array<i64: 1, 128>}, {transform_indices = @transform_4, window_bounds = array<i64: 1, 128>}, {transform_indices = @transform_5, window_bounds = array<i64: 128, 128>}, {pipeline_mode = #tpu.pipeline_mode<synchronous>, transform_indices = @transform_6, window_bounds = array<i64: 1, 128>}, {transform_indices = @transform_7, window_bounds = array<i64: 8, 128>}]} {
    %c0_i32 = arith.constant 0 : i32
    %0 = arith.cmpi eq, %arg1, %c0_i32 : i32
    %1 = arith.extui %0 : i1 to i32
    %c0_i32_0 = arith.constant 0 : i32
    %2 = arith.cmpi ne, %1, %c0_i32_0 : i32
    scf.if %2 {
      %cst_21 = arith.constant 0.000000e+00 : f32
      %29 = vector.broadcast %cst_21 : f32 to vector<8x128xf32>
      %c0_22 = arith.constant 0 : index
      %c0_23 = arith.constant 0 : index
      %30 = vector.load %arg10[%c0_22, %c0_23] : memref<8x128xf32, #tpu.memory_space<vmem>>, vector<8x128xf32>
      tpu.vector_store %arg10[%c0_22, %c0_23], %29 {strides = array<i32>} : memref<8x128xf32, #tpu.memory_space<vmem>>, vector<8x128xf32>,
    } else {
    }
    %c0 = arith.constant 0 : index
    %c0_1 = arith.constant 0 : index
    %3 = vector.load %arg2[%c0, %c0_1] : memref<8x32xf32, #tpu.memory_space<vmem>>, vector<8x32xf32>
    %c0_2 = arith.constant 0 : index
    %c0_3 = arith.constant 0 : index
    %4 = vector.load %arg3[%c0_2, %c0_3] : memref<32x128xf32, #tpu.memory_space<vmem>>, vector<32x128xf32>
    %cst = arith.constant dense<0.000000e+00> : vector<8x128xf32>
    %5 = tpu.matmul %3, %4, %cst {dimension_numbers = #tpu.dot_dimension_numbers<[1], [0], [0], [1], [0, 0, 1, 1], [], []>} : vector<8x32xf32>, vector<32x128xf32>, vector<8x128xf32> -> vector<8x128xf32>
    %c0_4 = arith.constant 0 : index
    %c0_5 = arith.constant 0 : index
    %6 = vector.load %arg5[%c0_4, %c0_5] : memref<1x128xf32, #tpu.memory_space<vmem>>, vector<1x128xf32>
    %7 = vector.broadcast %6 : vector<1x128xf32> to vector<8x128xf32>
    %8 = arith.addf %5, %7 : vector<8x128xf32>
    %c0_6 = arith.constant 0 : index
    %c0_7 = arith.constant 0 : index
    %9 = vector.load %arg4[%c0_6, %c0_7] : memref<32x128xf32, #tpu.memory_space<vmem>>, vector<32x128xf32>
    %cst_8 = arith.constant dense<0.000000e+00> : vector<8x128xf32>
    %10 = tpu.matmul %3, %9, %cst_8 {dimension_numbers = #tpu.dot_dimension_numbers<[1], [0], [0], [1], [0, 0, 1, 1], [], []>} : vector<8x32xf32>, vector<32x128xf32>, vector<8x128xf32> -> vector<8x128xf32>
    %c0_9 = arith.constant 0 : index
    %c0_10 = arith.constant 0 : index
    %11 = vector.load %arg6[%c0_9, %c0_10] : memref<1x128xf32, #tpu.memory_space<vmem>>, vector<1x128xf32>
    %12 = vector.broadcast %11 : vector<1x128xf32> to vector<8x128xf32>
    %13 = arith.addf %10, %12 : vector<8x128xf32>
    %14 = arith.negf %13 : vector<8x128xf32>
    %15 = math.exp %14 : vector<8x128xf32>
    %cst_11 = arith.constant 1.000000e+00 : f32
    %16 = vector.broadcast %cst_11 : f32 to vector<8x128xf32>
    %17 = arith.addf %16, %15 : vector<8x128xf32>
    %18 = arith.divf %16, %17 : vector<8x128xf32>
    %19 = arith.mulf %13, %18 : vector<8x128xf32>
    %20 = arith.mulf %8, %19 : vector<8x128xf32>
    %c0_12 = arith.constant 0 : index
    %c0_13 = arith.constant 0 : index
    %21 = vector.load %arg10[%c0_12, %c0_13] : memref<8x128xf32, #tpu.memory_space<vmem>>, vector<8x128xf32>
    %c0_14 = arith.constant 0 : index
    %c0_15 = arith.constant 0 : index
    %22 = vector.load %arg7[%c0_14, %c0_15] : memref<128x128xf32, #tpu.memory_space<vmem>>, vector<128x128xf32>
    %cst_16 = arith.constant dense<0.000000e+00> : vector<8x128xf32>
    %23 = tpu.matmul %20, %22, %cst_16 {dimension_numbers = #tpu.dot_dimension_numbers<[1], [0], [0], [1], [0, 0, 1, 1], [], []>} : vector<8x128xf32>, vector<128x128xf32>, vector<8x128xf32> -> vector<8x128xf32>
    %24 = arith.addf %21, %23 : vector<8x128xf32>
    %c0_17 = arith.constant 0 : index
    %c0_18 = arith.constant 0 : index
    %25 = vector.load %arg10[%c0_17, %c0_18] : memref<8x128xf32, #tpu.memory_space<vmem>>, vector<8x128xf32>
    tpu.vector_store %arg10[%c0_17, %c0_18], %24 {strides = array<i32>} : memref<8x128xf32, #tpu.memory_space<vmem>>, vector<8x128xf32>,
    %c0_i32_19 = arith.constant 0 : i32
    %26 = arith.cmpi eq, %arg1, %c0_i32_19 : i32
    %27 = arith.extui %26 : i1 to i32
    %c0_i32_20 = arith.constant 0 : i32
    %28 = arith.cmpi ne, %27, %c0_i32_20 : i32
    scf.if %28 {
      %c0_21 = arith.constant 0 : index
      %c0_22 = arith.constant 0 : index
      %29 = vector.load %arg10[%c0_21, %c0_22] : memref<8x128xf32, #tpu.memory_space<vmem>>, vector<8x128xf32>
      %c0_23 = arith.constant 0 : index
      %c0_24 = arith.constant 0 : index
      %30 = vector.load %arg8[%c0_23, %c0_24] : memref<1x128xf32, #tpu.memory_space<vmem>>, vector<1x128xf32>
      %31 = vector.broadcast %30 : vector<1x128xf32> to vector<8x128xf32>
      %32 = arith.addf %29, %31 : vector<8x128xf32>
      %c0_25 = arith.constant 0 : index
      %c0_26 = arith.constant 0 : index
      %33 = vector.load %arg9[%c0_25, %c0_26] : memref<8x128xf32, #tpu.memory_space<vmem>>, vector<8x128xf32>
      tpu.vector_store %arg9[%c0_25, %c0_26], %32 {strides = array<i32>} : memref<8x128xf32, #tpu.memory_space<vmem>>, vector<8x128xf32>,
    } else {
    }
    return
  }
  func.func @transform_0(%arg0: i32, %arg1: i32) -> (i32, i32) {
    %c0_i32 = arith.constant 0 : i32
    %c0_i32_0 = arith.constant 0 : i32
    return %arg0, %c0_i32 : i32, i32
  }
  func.func @transform_1(%arg0: i32, %arg1: i32) -> (i32, i32) {
    %c0_i32 = arith.constant 0 : i32
    %c0_i32_0 = arith.constant 0 : i32
    return %c0_i32, %arg1 : i32, i32
  }
  func.func @transform_2(%arg0: i32, %arg1: i32) -> (i32, i32) {
    %c0_i32 = arith.constant 0 : i32
    %c0_i32_0 = arith.constant 0 : i32
    return %c0_i32, %arg1 : i32, i32
  }
  func.func @transform_3(%arg0: i32, %arg1: i32) -> (i32, i32) {
    %c0_i32 = arith.constant 0 : i32
    %c0_i32_0 = arith.constant 0 : i32
    return %c0_i32, %arg1 : i32, i32
  }
  func.func @transform_4(%arg0: i32, %arg1: i32) -> (i32, i32) {
    %c0_i32 = arith.constant 0 : i32
    %c0_i32_0 = arith.constant 0 : i32
    return %c0_i32, %arg1 : i32, i32
  }
  func.func @transform_5(%arg0: i32, %arg1: i32) -> (i32, i32) {
    %c0_i32 = arith.constant 0 : i32
    %c0_i32_0 = arith.constant 0 : i32
    return %arg1, %c0_i32 : i32, i32
  }
  func.func @transform_6(%arg0: i32, %arg1: i32) -> (i32, i32) {
    %c0_i32 = arith.constant 0 : i32
    %c0_i32_0 = arith.constant 0 : i32
    %c0_i32_1 = arith.constant 0 : i32
    return %c0_i32, %c0_i32_0 : i32, i32
  }
  func.func @transform_7(%arg0: i32, %arg1: i32) -> (i32, i32) {
    %c0_i32 = arith.constant 0 : i32
    %c0_i32_0 = arith.constant 0 : i32
    return %arg0, %c0_i32 : i32, i32
  }
}

</mosaic_0001>

<llo_original>
// kernel: tpu_custom_call.1
$region0: #{tpu_custom_call.1}
  #allocation0 [shape = 'u32[]', space=smem, size = 0x4, offset = 0x4, fixed_abs, tag = 'smem constant byte address 0x4 - core index']
  #allocation1 [shape = 'u32[72,128]{1,0:T(1,128)}', space=vmem, size = 0x9000, scoped, tag = 'internal scratch']
  #allocation2 [shape = 'f32[8,128]{1,0:T(8,128)}', space=vmem, size = 0x1000, scoped, tag = 'scratch operand']
  %s0 = inlined_call_operand.hbm [shape: f32[16,32], index: 0, kind: input, shape index: {}]
  %s1 = inlined_call_operand.hbm [shape: f32[32,128], index: 1, kind: input, shape index: {}]
  %s2 = inlined_call_operand.hbm [shape: f32[32,128], index: 2, kind: input, shape index: {}]
  %s3 = inlined_call_operand.vmem [shape: f32[1,128], index: 3, kind: input, shape index: {}]
  %s4 = inlined_call_operand.vmem [shape: f32[1,128], index: 4, kind: input, shape index: {}]
  %s5 = inlined_call_operand.hbm [shape: f32[128,128], index: 5, kind: input, shape index: {}]
  %s6 = inlined_call_operand.vmem [shape: f32[1,128], index: 6, kind: input, shape index: {}]
  %s7 = inlined_call_operand.hbm [shape: f32[16,128], index: 7, kind: output, shape index: {}]
  %s8 = sld [smem:[#allocation0]]
  $region85: #{tpu_custom_call.1} parent=0
    _
  %s10 = ssub.s32 1, %s8
  %s11 = scalar_select 0, %s10, %s8
  $region1: #{tpu_custom_call.1} parent=0
    #allocation3 [shape = 'u8[8192]{0}', space=vmem, size = 0x2000, scoped, tag = 'input window, operand 0']
    #allocation4 [shape = 's32[2]{0}', space=sflag, size = 0x8, scoped, tag = 'scoped memory for tpu_custom_call.1']
    #allocation5 [shape = 's32[2]{0}', space=sflag, size = 0x8, scoped, tag = 'scoped memory for tpu_custom_call.1']
    #allocation6 [shape = 'u8[16384]{0}', space=vmem, size = 0x4000, scoped, tag = 'input window, operand 1, single buffered']
    #allocation7 [shape = 's32[1]{0}', space=sflag, size = 0x4, scoped, tag = 'scoped memory for tpu_custom_call.1']
    #allocation8 [shape = 'u8[16384]{0}', space=vmem, size = 0x4000, scoped, tag = 'input window, operand 2, single buffered']
    #allocation9 [shape = 'u8[65536]{0}', space=vmem, size = 0x10000, scoped, tag = 'input window, operand 5, single buffered']
    #allocation10 [shape = 's32[1]{0}', space=sflag, size = 0x4, scoped, tag = 'scoped memory for tpu_custom_call.1']
    #allocation11 [shape = 'u8[8192]{0}', space=vmem, size = 0x2000, scoped, tag = 'output window, operand 0']
    %12 = vsyncpa [#allocation4], 0
    %s13 = scalar_lea.sflag [#allocation4], 1
    %14 = vsyncpa %s13, 0
    %15 = vsyncpa [#allocation7], 0
    %16 = vsyncpa [#allocation10], 0
    %17 = vsyncpa [#allocation5], 0
    %s18 = scalar_lea.sflag [#allocation5], 1
    %19 = vsyncpa %s18, 0
    loop: start=0, step=1, limit=4
    $region2: #{tpu_custom_call.1} parent=1 // loop_pre_header
      _
    $region3: #{tpu_custom_call.1} parent=1 // loop_header
      %s21 = sphi 0, %s25
      %p22 = scmp.ge.s32.totalorder %s21, 4
      %s28 = sphi 0, %s40
      %s29 = sphi 0, %s36
      %s30 = sphi 0, %s28
      %s31 = sphi 0, %s29
      %s32 = sphi 0, %s30
      %s33 = sphi 0, %s31
      %s43 = sphi 0, %s45
      %s46 = sphi 0, %s43
      %s47 = sphi 0, %s46
      %s63 = sphi 0, %s47
      %s69 = sphi 0, %s71
      %s72 = sphi 0, %s69
      %s73 = sphi 0, %s72
      %s89 = sphi 0, %s73
      %s95 = sphi 0, %s97
      %s98 = sphi 0, %s95
      %s99 = sphi 0, %s98
      %s115 = sphi 0, %s99
      %s121 = sphi 0, %s123
      %s124 = sphi 0, %s121
      %s125 = sphi 0, %s124
      %s141 = sphi 0, %s125
      %s147 = sphi 0, %s149
      %s150 = sphi 0, %s147
      %s151 = sphi 0, %s150
      %s167 = sphi 0, %s151
      %s173 = sphi 0, %s175
      %s176 = sphi 0, %s173
      %s177 = sphi 0, %s176
      %s193 = sphi 0, %s177
      %s197 = sphi 0, %s197
      %s199 = sphi 0, %s197
      %s200 = sphi 0, %s199
      %s214 = sphi 0, %s200
      %s220 = sphi 0, %s222
      %s223 = sphi 0, %s220
      %s224 = sphi 0, %s223
      %s240 = sphi 0, %s224
    $region4: #{tpu_custom_call.1} parent=1 // loop_header_branch
      %24 = sbr.rel (%p22) target = $region8
    $region5: #{tpu_custom_call.1} parent=1 // loop_body
      %s26 = ssub.s32 %s21, 1
      %s27 = ssub.s32 %s21, 2
      %s34 = sadd.s32 1, %s29
      %p35 = scmp.ge.s32.totalorder %s34, 1
      %s36 = scalar_select %p35, 0, %s34
      %s37 = sadd.s32 1, %s28
      %s38 = scalar_select %p35, %s37, %s28
      %p39 = scmp.ge.s32.totalorder %s38, 2
      %s40 = scalar_select %p39, 0, %s38
      %s41 = ssub.s32 %s28, %s40
      %p42 = scmp.eq.s32.totalorder %s41, 0
      %s44 = sadd.s32 %s43, 1
      %s45 = scalar_select %p42, %s43, %s44
      %p48 = pneg %p42
      %p49 = scmp.eq.s32.totalorder %s21, 1
      %p50 = por %p48, %p49
      %p51 = scmp.ne.s32.totalorder %s43, %s46
      %p52 = scmp.eq.s32.totalorder %s21, 0
      %p53 = por %p51, %p52
      %p54 = scmp.ne.s32.totalorder %s43, %s46
      %p55 = scmp.eq.s32.totalorder %s26, 1
      %p56 = por %p54, %p55
      %p57 = scmp.ne.s32.totalorder %s46, %s47
      %p58 = scmp.eq.s32.totalorder %s26, 0
      %p59 = por %p57, %p58
      %p60 = scmp.ne.s32.totalorder %s46, %s47
      %p61 = scmp.eq.s32.totalorder %s27, 1
      %p62 = por %p60, %p61
      %p64 = scmp.ne.s32.totalorder %s47, %s63
      %p65 = scmp.eq.s32.totalorder %s27, 0
      %p66 = por %p64, %p65
      %s67 = ssub.s32 %s29, %s36
      %p68 = scmp.eq.s32.totalorder %s67, 0
      %s70 = sadd.s32 %s69, 1
      %s71 = scalar_select %p68, %s69, %s70
      %p74 = pneg %p68
      %p75 = scmp.eq.s32.totalorder %s21, 1
      %p76 = por %p74, %p75
      %p77 = scmp.ne.s32.totalorder %s69, %s72
      %p78 = scmp.eq.s32.totalorder %s21, 0
      %p79 = por %p77, %p78
      %p80 = scmp.ne.s32.totalorder %s69, %s72
      %p81 = scmp.eq.s32.totalorder %s26, 1
      %p82 = por %p80, %p81
      %p83 = scmp.ne.s32.totalorder %s72, %s73
      %p84 = scmp.eq.s32.totalorder %s26, 0
      %p85 = por %p83, %p84
      %p86 = scmp.ne.s32.totalorder %s72, %s73
      %p87 = scmp.eq.s32.totalorder %s27, 1
      %p88 = por %p86, %p87
      %p90 = scmp.ne.s32.totalorder %s73, %s89
      %p91 = scmp.eq.s32.totalorder %s27, 0
      %p92 = por %p90, %p91
      %s93 = ssub.s32 %s29, %s36
      %p94 = scmp.eq.s32.totalorder %s93, 0
      %s96 = sadd.s32 %s95, 1
      %s97 = scalar_select %p94, %s95, %s96
      %p100 = pneg %p94
      %p101 = scmp.eq.s32.totalorder %s21, 1
      %p102 = por %p100, %p101
      %p103 = scmp.ne.s32.totalorder %s95, %s98
      %p104 = scmp.eq.s32.totalorder %s21, 0
      %p105 = por %p103, %p104
      %p106 = scmp.ne.s32.totalorder %s95, %s98
      %p107 = scmp.eq.s32.totalorder %s26, 1
      %p108 = por %p106, %p107
      %p109 = scmp.ne.s32.totalorder %s98, %s99
      %p110 = scmp.eq.s32.totalorder %s26, 0
      %p111 = por %p109, %p110
      %p112 = scmp.ne.s32.totalorder %s98, %s99
      %p113 = scmp.eq.s32.totalorder %s27, 1
      %p114 = por %p112, %p113
      %p116 = scmp.ne.s32.totalorder %s99, %s115
      %p117 = scmp.eq.s32.totalorder %s27, 0
      %p118 = por %p116, %p117
      %s119 = ssub.s32 %s29, %s36
      %p120 = scmp.eq.s32.totalorder %s119, 0
      %s122 = sadd.s32 %s121, 1
      %s123 = scalar_select %p120, %s121, %s122
      %p126 = pneg %p120
      %p127 = scmp.eq.s32.totalorder %s21, 1
      %p128 = por %p126, %p127
      %p129 = scmp.ne.s32.totalorder %s121, %s124
      %p130 = scmp.eq.s32.totalorder %s21, 0
      %p131 = por %p129, %p130
      %p132 = scmp.ne.s32.totalorder %s121, %s124
      %p133 = scmp.eq.s32.totalorder %s26, 1
      %p134 = por %p132, %p133
      %p135 = scmp.ne.s32.totalorder %s124, %s125
      %p136 = scmp.eq.s32.totalorder %s26, 0
      %p137 = por %p135, %p136
      %p138 = scmp.ne.s32.totalorder %s124, %s125
      %p139 = scmp.eq.s32.totalorder %s27, 1
      %p140 = por %p138, %p139
      %p142 = scmp.ne.s32.totalorder %s125, %s141
      %p143 = scmp.eq.s32.totalorder %s27, 0
      %p144 = por %p142, %p143
      %s145 = ssub.s32 %s29, %s36
      %p146 = scmp.eq.s32.totalorder %s145, 0
      %s148 = sadd.s32 %s147, 1
      %s149 = scalar_select %p146, %s147, %s148
      %p152 = pneg %p146
      %p153 = scmp.eq.s32.totalorder %s21, 1
      %p154 = por %p152, %p153
      %p155 = scmp.ne.s32.totalorder %s147, %s150
      %p156 = scmp.eq.s32.totalorder %s21, 0
      %p157 = por %p155, %p156
      %p158 = scmp.ne.s32.totalorder %s147, %s150
      %p159 = scmp.eq.s32.totalorder %s26, 1
      %p160 = por %p158, %p159
      %p161 = scmp.ne.s32.totalorder %s150, %s151
      %p162 = scmp.eq.s32.totalorder %s26, 0
      %p163 = por %p161, %p162
      %p164 = scmp.ne.s32.totalorder %s150, %s151
      %p165 = scmp.eq.s32.totalorder %s27, 1
      %p166 = por %p164, %p165
      %p168 = scmp.ne.s32.totalorder %s151, %s167
      %p169 = scmp.eq.s32.totalorder %s27, 0
      %p170 = por %p168, %p169
      %s171 = ssub.s32 %s29, %s36
      %p172 = scmp.eq.s32.totalorder %s171, 0
      %s174 = sadd.s32 %s173, 1
      %s175 = scalar_select %p172, %s173, %s174
      %p178 = pneg %p172
      %p179 = scmp.eq.s32.totalorder %s21, 1
      %p180 = por %p178, %p179
      %p181 = scmp.ne.s32.totalorder %s173, %s176
      %p182 = scmp.eq.s32.totalorder %s21, 0
      %p183 = por %p181, %p182
      %p184 = scmp.ne.s32.totalorder %s173, %s176
      %p185 = scmp.eq.s32.totalorder %s26, 1
      %p186 = por %p184, %p185
      %p187 = scmp.ne.s32.totalorder %s176, %s177
      %p188 = scmp.eq.s32.totalorder %s26, 0
      %p189 = por %p187, %p188
      %p190 = scmp.ne.s32.totalorder %s176, %s177
      %p191 = scmp.eq.s32.totalorder %s27, 1
      %p192 = por %p190, %p191
      %p194 = scmp.ne.s32.totalorder %s177, %s193
      %p195 = scmp.eq.s32.totalorder %s27, 0
      %p196 = por %p194, %p195
      %s198 = sadd.s32 %s197, 1
      %p201 = scmp.eq.s32.totalorder %s21, 1
      %p202 = scmp.ne.s32.totalorder %s197, %s199
      %p203 = scmp.eq.s32.totalorder %s21, 0
      %p204 = por %p202, %p203
      %p205 = scmp.ne.s32.totalorder %s197, %s199
      %p206 = scmp.eq.s32.totalorder %s26, 1
      %p207 = por %p205, %p206
      %p208 = scmp.ne.s32.totalorder %s199, %s200
      %p209 = scmp.eq.s32.totalorder %s26, 0
      %p210 = por %p208, %p209
      %p211 = scmp.ne.s32.totalorder %s199, %s200
      %p212 = scmp.eq.s32.totalorder %s27, 1
      %p213 = por %p211, %p212
      %p215 = scmp.ne.s32.totalorder %s200, %s214
      %p216 = scmp.eq.s32.totalorder %s27, 0
      %p217 = por %p215, %p216
      %s218 = ssub.s32 %s28, %s40
      %p219 = scmp.eq.s32.totalorder %s218, 0
      %s221 = sadd.s32 %s220, 1
      %s222 = scalar_select %p219, %s220, %s221
      %p225 = pneg %p219
      %p226 = scmp.eq.s32.totalorder %s21, 1
      %p227 = por %p225, %p226
      %p228 = scmp.ne.s32.totalorder %s220, %s223
      %p229 = scmp.eq.s32.totalorder %s21, 0
      %p230 = por %p228, %p229
      %p231 = scmp.ne.s32.totalorder %s220, %s223
      %p232 = scmp.eq.s32.totalorder %s26, 1
      %p233 = por %p231, %p232
      %p234 = scmp.ne.s32.totalorder %s223, %s224
      %p235 = scmp.eq.s32.totalorder %s26, 0
      %p236 = por %p234, %p235
      %p237 = scmp.ne.s32.totalorder %s223, %s224
      %p238 = scmp.eq.s32.totalorder %s27, 1
      %p239 = por %p237, %p238
      %p241 = scmp.ne.s32.totalorder %s224, %s240
      %p242 = scmp.eq.s32.totalorder %s27, 0
      %p243 = por %p241, %p242
      %p244 = scmp.le.s32.totalorder 1, %s21
      %p245 = scmp.lt.s32.totalorder %s21, 3
      %p246 = pnand %p244, %p245
      %p247 = pneg %p246
      // Predicated region
      $region9: #{tpu_custom_call.1} parent=5 // pred_check
        _
      $region10: #{tpu_custom_call.1} parent=5 // pred_check_branch
        %249 = sbr.rel (%p246) target = $region12
      $region11: #{tpu_custom_call.1} parent=5 // pred_region
        %s250 = ssub.s32 %s21, 1
        // Predicated region
        $region13: #{tpu_custom_call.1} parent=11 // pred_check
          %p251 = pneg %p85
        $region14: #{tpu_custom_call.1} parent=11 // pred_check_branch
          %253 = sbr.rel (%p251) target = $region16
        $region15: #{tpu_custom_call.1} parent=11 // pred_region
          %255 = vsyncadd [#allocation7], 0
          %s256 = smul.addr %s31, 8
          %s257 = scalar_lea.hbm %s1, %s256
          %s258 = sshll.u32 %s257, 4
          %s259 = int_to_ptr.hbm [resolvable:$true] %s258
          %s260 = sshll.u32 [#allocation6], 4
          %s261 = int_to_ptr.vmem [resolvable:$true] %s260
          %266 = dma.hbm_to_vmem [thread:$0]  %s259, 512, %s261, [#allocation7], 128, 128, 8
        $region16: #{tpu_custom_call.1} parent=11 // pred_fallthru
          _
        // Predicated region
        $region17: #{tpu_custom_call.1} parent=11 // pred_check
          %p267 = pneg %p111
        $region18: #{tpu_custom_call.1} parent=11 // pred_check_branch
          %269 = sbr.rel (%p267) target = $region20
        $region19: #{tpu_custom_call.1} parent=11 // pred_region
          %271 = vsyncadd [#allocation7], 0
          %s272 = smul.addr %s31, 8
          %s273 = scalar_lea.hbm %s2, %s272
          %s274 = sshll.u32 %s273, 4
          %s275 = int_to_ptr.hbm [resolvable:$true] %s274
          %s276 = sshll.u32 [#allocation8], 4
          %s277 = int_to_ptr.vmem [resolvable:$true] %s276
          %282 = dma.hbm_to_vmem [thread:$0]  %s275, 512, %s277, [#allocation7], 128, 128, 8
        $region20: #{tpu_custom_call.1} parent=11 // pred_fallthru
          _
        // Predicated region
        $region21: #{tpu_custom_call.1} parent=11 // pred_check
          %p283 = pneg %p137
        $region22: #{tpu_custom_call.1} parent=11 // pred_check_branch
          %285 = sbr.rel (%p283) target = $region24
        $region23: #{tpu_custom_call.1} parent=11 // pred_region
          %p286 = scmp.lt.s32.totalorder %s31, 0
          %s287 = scalar_select %p286, %s31, 0
          %s288 = scalar_lea.vmem %s3, %s287
        $region24: #{tpu_custom_call.1} parent=11 // pred_fallthru
          _
        // Predicated region
        $region25: #{tpu_custom_call.1} parent=11 // pred_check
          %p289 = pneg %p163
        $region26: #{tpu_custom_call.1} parent=11 // pred_check_branch
          %291 = sbr.rel (%p289) target = $region28
        $region27: #{tpu_custom_call.1} parent=11 // pred_region
          %p292 = scmp.lt.s32.totalorder %s31, 0
          %s293 = scalar_select %p292, %s31, 0
          %s294 = scalar_lea.vmem %s4, %s293
        $region28: #{tpu_custom_call.1} parent=11 // pred_fallthru
          _
        // Predicated region
        $region29: #{tpu_custom_call.1} parent=11 // pred_check
          %p295 = pneg %p189
        $region30: #{tpu_custom_call.1} parent=11 // pred_check_branch
          %297 = sbr.rel (%p295) target = $region32
        $region31: #{tpu_custom_call.1} parent=11 // pred_region
          %s298 = smul.u32 16, %s31
          %300 = vsyncadd [#allocation10], 0
          %s301 = smul.addr %s298, 8
          %s302 = scalar_lea.hbm %s5, %s301
          %s303 = sshll.u32 %s302, 4
          %s304 = int_to_ptr.hbm [resolvable:$true] %s303
          %s305 = sshll.u32 [#allocation9], 4
          %s306 = int_to_ptr.vmem [resolvable:$true] %s305
          %311 = dma.hbm_to_vmem [thread:$0]  %s304, 2048, %s306, [#allocation10], 128, 128, 8
        $region32: #{tpu_custom_call.1} parent=11 // pred_fallthru
          _
        // Predicated region
        $region33: #{tpu_custom_call.1} parent=11 // pred_check
          %p312 = pneg %p210
        $region34: #{tpu_custom_call.1} parent=11 // pred_check_branch
          %314 = sbr.rel (%p312) target = $region36
        $region35: #{tpu_custom_call.1} parent=11 // pred_region
          _
        $region36: #{tpu_custom_call.1} parent=11 // pred_fallthru
          _
      $region12: #{tpu_custom_call.1} parent=5 // pred_fallthru
        _
      %p315 = scmp.lt.s32.totalorder %s21, 2
      // Predicated region
      $region37: #{tpu_custom_call.1} parent=5 // pred_check
        %p316 = pneg %p315
      $region38: #{tpu_custom_call.1} parent=5 // pred_check_branch
        %318 = sbr.rel (%p316) target = $region40
      $region39: #{tpu_custom_call.1} parent=5 // pred_region
        // Predicated region
        $region41: #{tpu_custom_call.1} parent=39 // pred_check
          %p319 = pneg %p53
        $region42: #{tpu_custom_call.1} parent=39 // pred_check_branch
          %321 = sbr.rel (%p319) target = $region44
        $region43: #{tpu_custom_call.1} parent=39 // pred_region
          %s322 = sand.u32 %s43, 1
          %s323 = scalar_lea.sflag [#allocation4], %s322
          %s324 = sand.u32 %s43, 1
          %s325 = smul.addr %s324, 8
          %s326 = scalar_lea.vmem [#allocation3], %s325
          %328 = vsyncadd %s323, 0
          %s329 = smul.addr %s28, 8
          %s330 = scalar_lea.hbm %s0, %s329
          %s332 = sshll.u32 %s330, 4
          %s333 = int_to_ptr.hbm [resolvable:$true] %s332
          %s334 = sshll.u32 %s326, 4
          %s335 = int_to_ptr.vmem [resolvable:$true] %s334
          %337 = dma.hbm_to_vmem [thread:$0]  %s333, 128, %s335, %s323
        $region44: #{tpu_custom_call.1} parent=39 // pred_fallthru
          _
      $region40: #{tpu_custom_call.1} parent=5 // pred_fallthru
        _
      %p338 = scmp.le.s32.totalorder 1, %s21
      %p339 = scmp.lt.s32.totalorder %s21, 3
      %p340 = pnand %p338, %p339
      %p341 = pneg %p340
      // Predicated region
      $region45: #{tpu_custom_call.1} parent=5 // pred_check
        _
      $region46: #{tpu_custom_call.1} parent=5 // pred_check_branch
        %343 = sbr.rel (%p340) target = $region48
      $region47: #{tpu_custom_call.1} parent=5 // pred_region
        %s344 = ssub.s32 %s21, 1
        %s345 = sand.u32 %s46, 1
        %s346 = scalar_lea.sflag [#allocation4], %s345
        %s347 = sand.u32 %s46, 1
        %s348 = smul.addr %s347, 8
        %s349 = scalar_lea.vmem [#allocation3], %s348
        // Predicated region
        $region49: #{tpu_custom_call.1} parent=47 // pred_check
          %p350 = pneg %p59
        $region50: #{tpu_custom_call.1} parent=47 // pred_check_branch
          %352 = sbr.rel (%p350) target = $region52
        $region51: #{tpu_custom_call.1} parent=47 // pred_region
          %354 = dma.done %s346, 128
        $region52: #{tpu_custom_call.1} parent=47 // pred_fallthru
          _
        // Predicated region
        $region53: #{tpu_custom_call.1} parent=47 // pred_check
          %p355 = pneg %p85
        $region54: #{tpu_custom_call.1} parent=47 // pred_check_branch
          %357 = sbr.rel (%p355) target = $region56
        $region55: #{tpu_custom_call.1} parent=47 // pred_region
          %359 = dma.done [#allocation7], 512
        $region56: #{tpu_custom_call.1} parent=47 // pred_fallthru
          _
        // Predicated region
        $region57: #{tpu_custom_call.1} parent=47 // pred_check
          %p360 = pneg %p111
        $region58: #{tpu_custom_call.1} parent=47 // pred_check_branch
          %362 = sbr.rel (%p360) target = $region60
        $region59: #{tpu_custom_call.1} parent=47 // pred_region
          %364 = dma.done [#allocation7], 512
        $region60: #{tpu_custom_call.1} parent=47 // pred_fallthru
          _
        // Predicated region
        $region61: #{tpu_custom_call.1} parent=47 // pred_check
          %p365 = pneg %p189
        $region62: #{tpu_custom_call.1} parent=47 // pred_check_branch
          %367 = sbr.rel (%p365) target = $region64
        $region63: #{tpu_custom_call.1} parent=47 // pred_region
          %369 = dma.done [#allocation10], 2048
        $region64: #{tpu_custom_call.1} parent=47 // pred_fallthru
          _
        %s370 = sand.u32 %s46, 1
        %s371 = scalar_lea.sflag [#allocation4], %s370
        %s372 = sand.u32 %s46, 1
        %s373 = smul.addr %s372, 8
        %s374 = scalar_lea.vmem [#allocation3], %s373
        %p375 = pneg %p59
        %p376 = pneg %p56
        %p377 = pneg %p85
        %p378 = pneg %p82
        %p379 = pneg %p111
        %p380 = pneg %p108
        %p381 = scmp.lt.s32.totalorder %s31, 0
        %s382 = scalar_select %p381, %s31, 0
        %s383 = scalar_lea.vmem %s3, %s382
        %p384 = pneg %p137
        %p385 = pneg %p134
        %p386 = scmp.lt.s32.totalorder %s31, 0
        %s387 = scalar_select %p386, %s31, 0
        %s388 = scalar_lea.vmem %s4, %s387
        %p389 = pneg %p163
        %p390 = pneg %p160
        %p391 = pneg %p189
        %p392 = pneg %p186
        %p393 = pneg %p210
        %p394 = pneg %p207
        %p395 = pneg %p236
        %p396 = pneg %p233
        %s397 = sand.u32 %s223, 1
        %s398 = scalar_lea.sflag [#allocation5], %s397
        %s399 = sand.u32 %s223, 1
        %s400 = smul.addr %s399, 8
        %s401 = scalar_lea.vmem [#allocation11], %s400
        %p402 = scmp.lt.s32.totalorder %s31, 0
        %s403 = scalar_select %p402, %s31, 0
        %s404 = scalar_lea.vmem %s3, %s403
        %p405 = scmp.lt.s32.totalorder %s31, 0
        %s406 = scalar_select %p405, %s31, 0
        %s407 = scalar_lea.vmem %s4, %s406
        %s408 = smul.u32 16, %s31
        %p409 = scmp.eq.s32.totalorder %s31, 0
        // Predicated region
        $region65: #{tpu_custom_call.1} parent=47 // pred_check
          %p410 = pneg %p409
        $region66: #{tpu_custom_call.1} parent=47 // pred_check_branch
          %412 = sbr.rel (%p410) target = $region68
        $region67: #{tpu_custom_call.1} parent=47 // pred_region
          %413 = vst [vmem:[#allocation2] sm:$0xff] 0.0
        $region68: #{tpu_custom_call.1} parent=47 // pred_fallthru
          _
        %v414 = vld [vmem:[%s349] sm:$0xff]
        %v415 = vld [vmem:[#allocation6] sm:$0xff]
        %v416 = vld [vmem:[#allocation6 + $0x8] sm:$0xff]
        %v417 = vld [vmem:[#allocation6 + $0x10] sm:$0xff]
        %v418 = vld [vmem:[#allocation6 + $0x18] sm:$0xff]
        %v419 = vld [vmem:[%s404] sm:$0x1]
        %v421 = vperm.slane %v419, 0
        %vm423 = vcmask 261120
        %v425 = vsel %vm423, %v414, 0
        %427 = vmatpush.msra.mxu0 0.0
        %428 = vmatpush.msra.mxu0 0.0
        %429 = vmatpush.msra.mxu0 0.0
        %430 = vmatpush.msra.mxu0 0.0
        %431 = vmatpush.msra.mxu0 0.0
        %432 = vmatpush.msra.mxu0 0.0
        %433 = vmatpush.msra.mxu0 0.0
        %434 = vmatpush.msra.mxu0 0.0
        %435 = vmatpush.msra.mxu0 0.0
        %436 = vmatpush.msra.mxu0 0.0
        %437 = vmatpush.msra.mxu0 0.0
        %438 = vmatpush.msra.mxu0 0.0
        %439 = vmatpush.msra.mxu0 %v418
        %440 = vmatpush.msra.mxu0 %v417
        %441 = vmatpush.msra.mxu0 %v416
        %442 = vmatpush.msra.mxu0 %v415
        %443 = vmatmul.f32.gmra.mxu0 %v425
        %v444 = vpop.f32.mrf.mxu0
        %v445 = vadd.f32 %v421, %v444
        %446 = vdwg.mxu0
        %v447 = vld [vmem:[#allocation8] sm:$0xff]
        %v448 = vld [vmem:[#allocation8 + $0x8] sm:$0xff]
        %v449 = vld [vmem:[#allocation8 + $0x10] sm:$0xff]
        %v450 = vld [vmem:[#allocation8 + $0x18] sm:$0xff]
        %v451 = vld [vmem:[%s407] sm:$0x1]
        %v453 = vperm.slane %v451, 0
        %455 = vmatpush.msra.mxu0 0.0
        %456 = vmatpush.msra.mxu0 0.0
        %457 = vmatpush.msra.mxu0 0.0
        %458 = vmatpush.msra.mxu0 0.0
        %459 = vmatpush.msra.mxu0 0.0
        %460 = vmatpush.msra.mxu0 0.0
        %461 = vmatpush.msra.mxu0 0.0
        %462 = vmatpush.msra.mxu0 0.0
        %463 = vmatpush.msra.mxu0 0.0
        %464 = vmatpush.msra.mxu0 0.0
        %465 = vmatpush.msra.mxu0 0.0
        %466 = vmatpush.msra.mxu0 0.0
        %467 = vmatpush.msra.mxu0 %v450
        %468 = vmatpush.msra.mxu0 %v449
        %469 = vmatpush.msra.mxu0 %v448
        %470 = vmatpush.msra.mxu0 %v447
        %471 = vmatmul.f32.gmra.mxu0 %v425
        %v472 = vpop.f32.mrf.mxu0
        %v473 = vadd.f32 %v453, %v472
        %474 = vdwg.mxu0
        %v475 = vxor.u32 %v473, 2147483648
        %v476 = vmul.f32 %v475, 1.442695
        %v477 = vpow.pop %v476
        %v478 = vadd.f32 %v477, 1.0
        %v479 = vrcp.pop %v478
        %v480 = vmul.f32 %v478, %v479
        %v481 = vsub.f32 1.0, %v480
        %v482 = vmul.f32 %v479, %v481
        %v483 = vadd.f32 %v479, %v482
        %vm484 = vweird.f32 %v478
        %vm485 = vweird.f32 %v479
        %vm486 = vmor %vm484, %vm485
        %v487 = vsel %vm486, %v479, %v483
        %v488 = vand.u32 2147483647, %v478
        %vm489 = vcmp.eq.f32.partialorder %v488, 8.507059e+37
        %v490 = vand.u32 %v478, 2147483648
        %v491 = vor.u32 1.1754944e-38, %v490
        %v492 = vsel %vm489, %v491, %v487
        %v493 = vmul.f32 1.0, %v492
        %v494 = vmul.f32 %v473, %v493
        %v495 = vmul.f32 %v445, %v494
        %v496 = vld [vmem:[#allocation2] sm:$0xff]
        %v497 = vld [vmem:[#allocation9] sm:$0xff]
        %v498 = vld [vmem:[#allocation9 + $0x8] sm:$0xff]
        %v499 = vld [vmem:[#allocation9 + $0x10] sm:$0xff]
        %v500 = vld [vmem:[#allocation9 + $0x18] sm:$0xff]
        %v501 = vld [vmem:[#allocation9 + $0x20] sm:$0xff]
        %v502 = vld [vmem:[#allocation9 + $0x28] sm:$0xff]
        %v503 = vld [vmem:[#allocation9 + $0x30] sm:$0xff]
        %v504 = vld [vmem:[#allocation9 + $0x38] sm:$0xff]
        %v505 = vld [vmem:[#allocation9 + $0x40] sm:$0xff]
        %v506 = vld [vmem:[#allocation9 + $0x48] sm:$0xff]
        %v507 = vld [vmem:[#allocation9 + $0x50] sm:$0xff]
        %v508 = vld [vmem:[#allocation9 + $0x58] sm:$0xff]
        %v509 = vld [vmem:[#allocation9 + $0x60] sm:$0xff]
        %v510 = vld [vmem:[#allocation9 + $0x68] sm:$0xff]
        %v511 = vld [vmem:[#allocation9 + $0x70] sm:$0xff]
        %v512 = vld [vmem:[#allocation9 + $0x78] sm:$0xff]
        %513 = vmatpush.msra.mxu0 %v512
        %514 = vmatpush.msra.mxu0 %v511
        %515 = vmatpush.msra.mxu0 %v510
        %516 = vmatpush.msra.mxu0 %v509
        %517 = vmatpush.msra.mxu0 %v508
        %518 = vmatpush.msra.mxu0 %v507
        %519 = vmatpush.msra.mxu0 %v506
        %520 = vmatpush.msra.mxu0 %v505
        %521 = vmatpush.msra.mxu0 %v504
        %522 = vmatpush.msra.mxu0 %v503
        %523 = vmatpush.msra.mxu0 %v502
        %524 = vmatpush.msra.mxu0 %v501
        %525 = vmatpush.msra.mxu0 %v500
        %526 = vmatpush.msra.mxu0 %v499
        %527 = vmatpush.msra.mxu0 %v498
        %528 = vmatpush.msra.mxu0 %v497
        %529 = vmatmul.f32.gmra.mxu0 %v495
        %v530 = vpop.f32.mrf.mxu0
        %v531 = vadd.f32 0.0, %v530
        %532 = vdwg.mxu0
        %v533 = vadd.f32 %v496, %v531
        %534 = vst [vmem:[#allocation2] sm:$0xff] %v533
        // Predicated region
        $region69: #{tpu_custom_call.1} parent=47 // pred_check
          %p535 = pneg %p409
        $region70: #{tpu_custom_call.1} parent=47 // pred_check_branch
          %537 = sbr.rel (%p535) target = $region72
        $region71: #{tpu_custom_call.1} parent=47 // pred_region
          %v538 = vld [vmem:[#allocation2] sm:$0xff]
          %v539 = vld [vmem:[%s6] sm:$0x1]
          %v541 = vperm.slane %v539, 0
          %v543 = vadd.f32 %v538, %v541
          %544 = vst [vmem:[%s401] sm:$0xff] %v543
        $region72: #{tpu_custom_call.1} parent=47 // pred_fallthru
          _
        %s545 = sand.u32 %s223, 1
        %s546 = scalar_lea.sflag [#allocation5], %s545
        %s547 = sand.u32 %s223, 1
        %s548 = smul.addr %s547, 8
        %s549 = scalar_lea.vmem [#allocation11], %s548
        // Predicated region
        $region73: #{tpu_custom_call.1} parent=47 // pred_check
          %p550 = pneg %p233
        $region74: #{tpu_custom_call.1} parent=47 // pred_check_branch
          %552 = sbr.rel (%p550) target = $region76
        $region75: #{tpu_custom_call.1} parent=47 // pred_region
          %554 = vsyncadd %s546, 0
          %s555 = smul.addr %s30, 8
          %s556 = scalar_lea.hbm %s7, %s555
          %s558 = sshll.u32 %s549, 4
          %s559 = int_to_ptr.vmem [resolvable:$true] %s558
          %s560 = sshll.u32 %s556, 4
          %s561 = int_to_ptr.hbm [resolvable:$true] %s560
          %563 = dma.vmem_to_hbm [thread:$0]  %s559, 128, %s561, %s546
        $region76: #{tpu_custom_call.1} parent=47 // pred_fallthru
          _
      $region48: #{tpu_custom_call.1} parent=5 // pred_fallthru
        _
      %p564 = scmp.le.s32.totalorder 2, %s21
      // Predicated region
      $region77: #{tpu_custom_call.1} parent=5 // pred_check
        %p565 = pneg %p564
      $region78: #{tpu_custom_call.1} parent=5 // pred_check_branch
        %567 = sbr.rel (%p565) target = $region80
      $region79: #{tpu_custom_call.1} parent=5 // pred_region
        %s568 = ssub.s32 %s21, 2
        // Predicated region
        $region81: #{tpu_custom_call.1} parent=79 // pred_check
          %p569 = pneg %p239
        $region82: #{tpu_custom_call.1} parent=79 // pred_check_branch
          %571 = sbr.rel (%p569) target = $region84
        $region83: #{tpu_custom_call.1} parent=79 // pred_region
          %s572 = sand.u32 %s224, 1
          %s573 = scalar_lea.sflag [#allocation5], %s572
          %s574 = sand.u32 %s224, 1
          %s575 = smul.addr %s574, 8
          %s576 = scalar_lea.vmem [#allocation11], %s575
          %578 = dma.done %s573, 128
        $region84: #{tpu_custom_call.1} parent=79 // pred_fallthru
          _
      $region80: #{tpu_custom_call.1} parent=5 // pred_fallthru
        _
    $region6: #{tpu_custom_call.1} parent=1 // loop_footer
      %s25 = sadd.s32 1, %s21
    $region7: #{tpu_custom_call.1} parent=1 // loop_footer_branch
      %20 = sbr.rel target = $region3
    $region8: #{tpu_custom_call.1} parent=1 // loop_exit
      _
    %579 = vsyncpa [#allocation4], 1
    %s580 = scalar_lea.sflag [#allocation4], 1
    %581 = vsyncpa %s580, 1
    %582 = vsyncpa [#allocation7], 1
    %583 = vsyncpa [#allocation10], 1
    %584 = vsyncpa [#allocation5], 1
    %s585 = scalar_lea.sflag [#allocation5], 1
    %586 = vsyncpa %s585, 1

// kernel: tpu_custom_call.1
$region0: #{tpu_custom_call.1}
  #allocation0 [shape = 'u32[]', space=smem, size = 0x4, offset = 0x4, fixed_abs, tag = 'smem constant byte address 0x4 - core index']
  #allocation1 [shape = 'u32[72,128]{1,0:T(1,128)}', space=vmem, size = 0x9000, scoped, tag = 'internal scratch']
  #allocation2 [shape = 'f32[8,128]{1,0:T(8,128)}', space=vmem, size = 0x1000, scoped, tag = 'scratch operand']
  %s0 = inlined_call_operand.hbm [shape: f32[16,32], index: 0, kind: input, shape index: {}]
  %s1 = inlined_call_operand.hbm [shape: f32[32,128], index: 1, kind: input, shape index: {}]
  %s2 = inlined_call_operand.hbm [shape: f32[32,128], index: 2, kind: input, shape index: {}]
  %s3 = inlined_call_operand.vmem [shape: f32[1,128], index: 3, kind: input, shape index: {}]
  %s4 = inlined_call_operand.vmem [shape: f32[1,128], index: 4, kind: input, shape index: {}]
  %s5 = inlined_call_operand.hbm [shape: f32[128,128], index: 5, kind: input, shape index: {}]
  %s6 = inlined_call_operand.vmem [shape: f32[1,128], index: 6, kind: input, shape index: {}]
  %s7 = inlined_call_operand.hbm [shape: f32[16,128], index: 7, kind: output, shape index: {}]
  %s8 = sld [smem:[#allocation0]]
  $region85: #{tpu_custom_call.1} parent=0
    _
  %s10 = ssub.s32 1, %s8
  %s11 = scalar_select 0, %s10, %s8
  $region1: #{tpu_custom_call.1} parent=0
    #allocation3 [shape = 'u8[8192]{0}', space=vmem, size = 0x2000, scoped, tag = 'input window, operand 0']
    #allocation4 [shape = 's32[2]{0}', space=sflag, size = 0x8, scoped, tag = 'scoped memory for tpu_custom_call.1']
    #allocation5 [shape = 's32[2]{0}', space=sflag, size = 0x8, scoped, tag = 'scoped memory for tpu_custom_call.1']
    #allocation6 [shape = 'u8[16384]{0}', space=vmem, size = 0x4000, scoped, tag = 'input window, operand 1, single buffered']
    #allocation7 [shape = 's32[1]{0}', space=sflag, size = 0x4, scoped, tag = 'scoped memory for tpu_custom_call.1']
    #allocation8 [shape = 'u8[16384]{0}', space=vmem, size = 0x4000, scoped, tag = 'input window, operand 2, single buffered']
    #allocation9 [shape = 'u8[65536]{0}', space=vmem, size = 0x10000, scoped, tag = 'input window, operand 5, single buffered']
    #allocation10 [shape = 's32[1]{0}', space=sflag, size = 0x4, scoped, tag = 'scoped memory for tpu_custom_call.1']
    #allocation11 [shape = 'u8[8192]{0}', space=vmem, size = 0x2000, scoped, tag = 'output window, operand 0']
    %12 = vsyncpa [#allocation4], 0
    %s13 = scalar_lea.sflag [#allocation4], 1
    %14 = vsyncpa %s13, 0
    %15 = vsyncpa [#allocation7], 0
    %16 = vsyncpa [#allocation10], 0
    %17 = vsyncpa [#allocation5], 0
    %s18 = scalar_lea.sflag [#allocation5], 1
    %19 = vsyncpa %s18, 0
    loop: start=0, step=1, limit=4
    $region2: #{tpu_custom_call.1} parent=1 // loop_pre_header
      _
    $region3: #{tpu_custom_call.1} parent=1 // loop_header
      %s21 = sphi 0, %s25
      %p22 = scmp.ge.s32.totalorder %s21, 4
      %s28 = sphi 0, %s40
      %s29 = sphi 0, %s36
      %s30 = sphi 0, %s28
      %s31 = sphi 0, %s29
      %s32 = sphi 0, %s30
      %s33 = sphi 0, %s31
      %s43 = sphi 0, %s45
      %s46 = sphi 0, %s43
      %s47 = sphi 0, %s46
      %s63 = sphi 0, %s47
      %s69 = sphi 0, %s71
      %s72 = sphi 0, %s69
      %s73 = sphi 0, %s72
      %s89 = sphi 0, %s73
      %s95 = sphi 0, %s97
      %s98 = sphi 0, %s95
      %s99 = sphi 0, %s98
      %s115 = sphi 0, %s99
      %s121 = sphi 0, %s123
      %s124 = sphi 0, %s121
      %s125 = sphi 0, %s124
      %s141 = sphi 0, %s125
      %s147 = sphi 0, %s149
      %s150 = sphi 0, %s147
      %s151 = sphi 0, %s150
      %s167 = sphi 0, %s151
      %s173 = sphi 0, %s175
      %s176 = sphi 0, %s173
      %s177 = sphi 0, %s176
      %s193 = sphi 0, %s177
      %s197 = sphi 0, %s197
      %s199 = sphi 0, %s197
      %s200 = sphi 0, %s199
      %s214 = sphi 0, %s200
      %s220 = sphi 0, %s222
      %s223 = sphi 0, %s220
      %s224 = sphi 0, %s223
      %s240 = sphi 0, %s224
    $region4: #{tpu_custom_call.1} parent=1 // loop_header_branch
      %24 = sbr.rel (%p22) target = $region8
    $region5: #{tpu_custom_call.1} parent=1 // loop_body
      %s26 = ssub.s32 %s21, 1
      %s27 = ssub.s32 %s21, 2
      %s34 = sadd.s32 1, %s29
      %p35 = scmp.ge.s32.totalorder %s34, 1
      %s36 = scalar_select %p35, 0, %s34
      %s37 = sadd.s32 1, %s28
      %s38 = scalar_select %p35, %s37, %s28
      %p39 = scmp.ge.s32.totalorder %s38, 2
      %s40 = scalar_select %p39, 0, %s38
      %s41 = ssub.s32 %s28, %s40
      %p42 = scmp.eq.s32.totalorder %s41, 0
      %s44 = sadd.s32 %s43, 1
      %s45 = scalar_select %p42, %s43, %s44
      %p48 = pneg %p42
      %p49 = scmp.eq.s32.totalorder %s21, 1
      %p50 = por %p48, %p49
      %p51 = scmp.ne.s32.totalorder %s43, %s46
      %p52 = scmp.eq.s32.totalorder %s21, 0
      %p53 = por %p51, %p52
      %p54 = scmp.ne.s32.totalorder %s43, %s46
      %p55 = scmp.eq.s32.totalorder %s26, 1
      %p56 = por %p54, %p55
      %p57 = scmp.ne.s32.totalorder %s46, %s47
      %p58 = scmp.eq.s32.totalorder %s26, 0
      %p59 = por %p57, %p58
      %p60 = scmp.ne.s32.totalorder %s46, %s47
      %p61 = scmp.eq.s32.totalorder %s27, 1
      %p62 = por %p60, %p61
      %p64 = scmp.ne.s32.totalorder %s47, %s63
      %p65 = scmp.eq.s32.totalorder %s27, 0
      %p66 = por %p64, %p65
      %s67 = ssub.s32 %s29, %s36
      %p68 = scmp.eq.s32.totalorder %s67, 0
      %s70 = sadd.s32 %s69, 1
      %s71 = scalar_select %p68, %s69, %s70
      %p74 = pneg %p68
      %p75 = scmp.eq.s32.totalorder %s21, 1
      %p76 = por %p74, %p75
      %p77 = scmp.ne.s32.totalorder %s69, %s72
      %p78 = scmp.eq.s32.totalorder %s21, 0
      %p79 = por %p77, %p78
      %p80 = scmp.ne.s32.totalorder %s69, %s72
      %p81 = scmp.eq.s32.totalorder %s26, 1
      %p82 = por %p80, %p81
      %p83 = scmp.ne.s32.totalorder %s72, %s73
      %p84 = scmp.eq.s32.totalorder %s26, 0
      %p85 = por %p83, %p84
      %p86 = scmp.ne.s32.totalorder %s72, %s73
      %p87 = scmp.eq.s32.totalorder %s27, 1
      %p88 = por %p86, %p87
      %p90 = scmp.ne.s32.totalorder %s73, %s89
      %p91 = scmp.eq.s32.totalorder %s27, 0
      %p92 = por %p90, %p91
      %s93 = ssub.s32 %s29, %s36
      %p94 = scmp.eq.s32.totalorder %s93, 0
      %s96 = sadd.s32 %s95, 1
      %s97 = scalar_select %p94, %s95, %s96
      %p100 = pneg %p94
      %p101 = scmp.eq.s32.totalorder %s21, 1
      %p102 = por %p100, %p101
      %p103 = scmp.ne.s32.totalorder %s95, %s98
      %p104 = scmp.eq.s32.totalorder %s21, 0
      %p105 = por %p103, %p104
      %p106 = scmp.ne.s32.totalorder %s95, %s98
      %p107 = scmp.eq.s32.totalorder %s26, 1
      %p108 = por %p106, %p107
      %p109 = scmp.ne.s32.totalorder %s98, %s99
      %p110 = scmp.eq.s32.totalorder %s26, 0
      %p111 = por %p109, %p110
      %p112 = scmp.ne.s32.totalorder %s98, %s99
      %p113 = scmp.eq.s32.totalorder %s27, 1
      %p114 = por %p112, %p113
      %p116 = scmp.ne.s32.totalorder %s99, %s115
      %p117 = scmp.eq.s32.totalorder %s27, 0
      %p118 = por %p116, %p117
      %s119 = ssub.s32 %s29, %s36
      %p120 = scmp.eq.s32.totalorder %s119, 0
      %s122 = sadd.s32 %s121, 1
      %s123 = scalar_select %p120, %s121, %s122
      %p126 = pneg %p120
      %p127 = scmp.eq.s32.totalorder %s21, 1
      %p128 = por %p126, %p127
      %p129 = scmp.ne.s32.totalorder %s121, %s124
      %p130 = scmp.eq.s32.totalorder %s21, 0
      %p131 = por %p129, %p130
      %p132 = scmp.ne.s32.totalorder %s121, %s124
      %p133 = scmp.eq.s32.totalorder %s26, 1
      %p134 = por %p132, %p133
      %p135 = scmp.ne.s32.totalorder %s124, %s125
      %p136 = scmp.eq.s32.totalorder %s26, 0
      %p137 = por %p135, %p136
      %p138 = scmp.ne.s32.totalorder %s124, %s125
      %p139 = scmp.eq.s32.totalorder %s27, 1
      %p140 = por %p138, %p139
      %p142 = scmp.ne.s32.totalorder %s125, %s141
      %p143 = scmp.eq.s32.totalorder %s27, 0
      %p144 = por %p142, %p143
      %s145 = ssub.s32 %s29, %s36
      %p146 = scmp.eq.s32.totalorder %s145, 0
      %s148 = sadd.s32 %s147, 1
      %s149 = scalar_select %p146, %s147, %s148
      %p152 = pneg %p146
      %p153 = scmp.eq.s32.totalorder %s21, 1
      %p154 = por %p152, %p153
      %p155 = scmp.ne.s32.totalorder %s147, %s150
      %p156 = scmp.eq.s32.totalorder %s21, 0
      %p157 = por %p155, %p156
      %p158 = scmp.ne.s32.totalorder %s147, %s150
      %p159 = scmp.eq.s32.totalorder %s26, 1
      %p160 = por %p158, %p159
      %p161 = scmp.ne.s32.totalorder %s150, %s151
      %p162 = scmp.eq.s32.totalorder %s26, 0
      %p163 = por %p161, %p162
      %p164 = scmp.ne.s32.totalorder %s150, %s151
      %p165 = scmp.eq.s32.totalorder %s27, 1
      %p166 = por %p164, %p165
      %p168 = scmp.ne.s32.totalorder %s151, %s167
      %p169 = scmp.eq.s32.totalorder %s27, 0
      %p170 = por %p168, %p169
      %s171 = ssub.s32 %s29, %s36
      %p172 = scmp.eq.s32.totalorder %s171, 0
      %s174 = sadd.s32 %s173, 1
      %s175 = scalar_select %p172, %s173, %s174
      %p178 = pneg %p172
      %p179 = scmp.eq.s32.totalorder %s21, 1
      %p180 = por %p178, %p179
      %p181 = scmp.ne.s32.totalorder %s173, %s176
      %p182 = scmp.eq.s32.totalorder %s21, 0
      %p183 = por %p181, %p182
      %p184 = scmp.ne.s32.totalorder %s173, %s176
      %p185 = scmp.eq.s32.totalorder %s26, 1
      %p186 = por %p184, %p185
      %p187 = scmp.ne.s32.totalorder %s176, %s177
      %p188 = scmp.eq.s32.totalorder %s26, 0
      %p189 = por %p187, %p188
      %p190 = scmp.ne.s32.totalorder %s176, %s177
      %p191 = scmp.eq.s32.totalorder %s27, 1
      %p192 = por %p190, %p191
      %p194 = scmp.ne.s32.totalorder %s177, %s193
      %p195 = scmp.eq.s32.totalorder %s27, 0
      %p196 = por %p194, %p195
      %s198 = sadd.s32 %s197, 1
      %p201 = scmp.eq.s32.totalorder %s21, 1
      %p202 = scmp.ne.s32.totalorder %s197, %s199
      %p203 = scmp.eq.s32.totalorder %s21, 0
      %p204 = por %p202, %p203
      %p205 = scmp.ne.s32.totalorder %s197, %s199
      %p206 = scmp.eq.s32.totalorder %s26, 1
      %p207 = por %p205, %p206
      %p208 = scmp.ne.s32.totalorder %s199, %s200
      %p209 = scmp.eq.s32.totalorder %s26, 0
      %p210 = por %p208, %p209
      %p211 = scmp.ne.s32.totalorder %s199, %s200
      %p212 = scmp.eq.s32.totalorder %s27, 1
      %p213 = por %p211, %p212
      %p215 = scmp.ne.s32.totalorder %s200, %s214
      %p216 = scmp.eq.s32.totalorder %s27, 0
      %p217 = por %p215, %p216
      %s218 = ssub.s32 %s28, %s40
      %p219 = scmp.eq.s32.totalorder %s218, 0
      %s221 = sadd.s32 %s220, 1
      %s222 = scalar_select %p219, %s220, %s221
      %p225 = pneg %p219
      %p226 = scmp.eq.s32.totalorder %s21, 1
      %p227 = por %p225, %p226
      %p228 = scmp.ne.s32.totalorder %s220, %s223
      %p229 = scmp.eq.s32.totalorder %s21, 0
      %p230 = por %p228, %p229
      %p231 = scmp.ne.s32.totalorder %s220, %s223
      %p232 = scmp.eq.s32.totalorder %s26, 1
      %p233 = por %p231, %p232
      %p234 = scmp.ne.s32.totalorder %s223, %s224
      %p235 = scmp.eq.s32.totalorder %s26, 0
      %p236 = por %p234, %p235
      %p237 = scmp.ne.s32.totalorder %s223, %s224
      %p238 = scmp.eq.s32.totalorder %s27, 1
      %p239 = por %p237, %p238
      %p241 = scmp.ne.s32.totalorder %s224, %s240
      %p242 = scmp.eq.s32.totalorder %s27, 0
      %p243 = por %p241, %p242
      %p244 = scmp.le.s32.totalorder 1, %s21
      %p245 = scmp.lt.s32.totalorder %s21, 3
      %p246 = pnand %p244, %p245
      %p247 = pneg %p246
      // Predicated region
      $region9: #{tpu_custom_call.1} parent=5 // pred_check
        _
      $region10: #{tpu_custom_call.1} parent=5 // pred_check_branch
        %249 = sbr.rel (%p246) target = $region12
      $region11: #{tpu_custom_call.1} parent=5 // pred_region
        %s250 = ssub.s32 %s21, 1
        // Predicated region
        $region13: #{tpu_custom_call.1} parent=11 // pred_check
          %p251 = pneg %p85
        $region14: #{tpu_custom_call.1} parent=11 // pred_check_branch
          %253 = sbr.rel (%p251) target = $region16
        $region15: #{tpu_custom_call.1} parent=11 // pred_region
          %255 = vsyncadd [#allocation7], 0
          %s256 = smul.addr %s31, 8
          %s257 = scalar_lea.hbm %s1, %s256
          %s258 = sshll.u32 %s257, 4
          %s259 = int_to_ptr.hbm [resolvable:$true] %s258
          %s260 = sshll.u32 [#allocation6], 4
          %s261 = int_to_ptr.vmem [resolvable:$true] %s260
          %266 = dma.hbm_to_vmem [thread:$0]  %s259, 512, %s261, [#allocation7], 128, 128, 8
        $region16: #{tpu_custom_call.1} parent=11 // pred_fallthru
          _
        // Predicated region
        $region17: #{tpu_custom_call.1} parent=11 // pred_check
          %p267 = pneg %p111
        $region18: #{tpu_custom_call.1} parent=11 // pred_check_branch
          %269 = sbr.rel (%p267) target = $region20
        $region19: #{tpu_custom_call.1} parent=11 // pred_region
          %271 = vsyncadd [#allocation7], 0
          %s272 = smul.addr %s31, 8
          %s273 = scalar_lea.hbm %s2, %s272
          %s274 = sshll.u32 %s273, 4
          %s275 = int_to_ptr.hbm [resolvable:$true] %s274
          %s276 = sshll.u32 [#allocation8], 4
          %s277 = int_to_ptr.vmem [resolvable:$true] %s276
          %282 = dma.hbm_to_vmem [thread:$0]  %s275, 512, %s277, [#allocation7], 128, 128, 8
        $region20: #{tpu_custom_call.1} parent=11 // pred_fallthru
          _
        // Predicated region
        $region21: #{tpu_custom_call.1} parent=11 // pred_check
          %p283 = pneg %p137
        $region22: #{tpu_custom_call.1} parent=11 // pred_check_branch
          %285 = sbr.rel (%p283) target = $region24
        $region23: #{tpu_custom_call.1} parent=11 // pred_region
          %p286 = scmp.lt.s32.totalorder %s31, 0
          %s287 = scalar_select %p286, %s31, 0
          %s288 = scalar_lea.vmem %s3, %s287
        $region24: #{tpu_custom_call.1} parent=11 // pred_fallthru
          _
        // Predicated region
        $region25: #{tpu_custom_call.1} parent=11 // pred_check
          %p289 = pneg %p163
        $region26: #{tpu_custom_call.1} parent=11 // pred_check_branch
          %291 = sbr.rel (%p289) target = $region28
        $region27: #{tpu_custom_call.1} parent=11 // pred_region
          %p292 = scmp.lt.s32.totalorder %s31, 0
          %s293 = scalar_select %p292, %s31, 0
          %s294 = scalar_lea.vmem %s4, %s293
        $region28: #{tpu_custom_call.1} parent=11 // pred_fallthru
          _
        // Predicated region
        $region29: #{tpu_custom_call.1} parent=11 // pred_check
          %p295 = pneg %p189
        $region30: #{tpu_custom_call.1} parent=11 // pred_check_branch
          %297 = sbr.rel (%p295) target = $region32
        $region31: #{tpu_custom_call.1} parent=11 // pred_region
          %s298 = smul.u32 16, %s31
          %300 = vsyncadd [#allocation10], 0
          %s301 = smul.addr %s298, 8
          %s302 = scalar_lea.hbm %s5, %s301
          %s303 = sshll.u32 %s302, 4
          %s304 = int_to_ptr.hbm [resolvable:$true] %s303
          %s305 = sshll.u32 [#allocation9], 4
          %s306 = int_to_ptr.vmem [resolvable:$true] %s305
          %311 = dma.hbm_to_vmem [thread:$0]  %s304, 2048, %s306, [#allocation10], 128, 128, 8
        $region32: #{tpu_custom_call.1} parent=11 // pred_fallthru
          _
        // Predicated region
        $region33: #{tpu_custom_call.1} parent=11 // pred_check
          %p312 = pneg %p210
        $region34: #{tpu_custom_call.1} parent=11 // pred_check_branch
          %314 = sbr.rel (%p312) target = $region36
        $region35: #{tpu_custom_call.1} parent=11 // pred_region
          _
        $region36: #{tpu_custom_call.1} parent=11 // pred_fallthru
          _
      $region12: #{tpu_custom_call.1} parent=5 // pred_fallthru
        _
      %p315 = scmp.lt.s32.totalorder %s21, 2
      // Predicated region
      $region37: #{tpu_custom_call.1} parent=5 // pred_check
        %p316 = pneg %p315
      $region38: #{tpu_custom_call.1} parent=5 // pred_check_branch
        %318 = sbr.rel (%p316) target = $region40
      $region39: #{tpu_custom_call.1} parent=5 // pred_region
        // Predicated region
        $region41: #{tpu_custom_call.1} parent=39 // pred_check
          %p319 = pneg %p53
        $region42: #{tpu_custom_call.1} parent=39 // pred_check_branch
          %321 = sbr.rel (%p319) target = $region44
        $region43: #{tpu_custom_call.1} parent=39 // pred_region
          %s322 = sand.u32 %s43, 1
          %s323 = scalar_lea.sflag [#allocation4], %s322
          %s324 = sand.u32 %s43, 1
          %s325 = smul.addr %s324, 8
          %s326 = scalar_lea.vmem [#allocation3], %s325
          %328 = vsyncadd %s323, 0
          %s329 = smul.addr %s28, 8
          %s330 = scalar_lea.hbm %s0, %s329
          %s332 = sshll.u32 %s330, 4
          %s333 = int_to_ptr.hbm [resolvable:$true] %s332
          %s334 = sshll.u32 %s326, 4
          %s335 = int_to_ptr.vmem [resolvable:$true] %s334
          %337 = dma.hbm_to_vmem [thread:$0]  %s333, 128, %s335, %s323
        $region44: #{tpu_custom_call.1} parent=39 // pred_fallthru
          _
      $region40: #{tpu_custom_call.1} parent=5 // pred_fallthru
        _
      %p338 = scmp.le.s32.totalorder 1, %s21
      %p339 = scmp.lt.s32.totalorder %s21, 3
      %p340 = pnand %p338, %p339
      %p341 = pneg %p340
      // Predicated region
      $region45: #{tpu_custom_call.1} parent=5 // pred_check
        _
      $region46: #{tpu_custom_call.1} parent=5 // pred_check_branch
        %343 = sbr.rel (%p340) target = $region48
      $region47: #{tpu_custom_call.1} parent=5 // pred_region
        %s344 = ssub.s32 %s21, 1
        %s345 = sand.u32 %s46, 1
        %s346 = scalar_lea.sflag [#allocation4], %s345
        %s347 = sand.u32 %s46, 1
        %s348 = smul.addr %s347, 8
        %s349 = scalar_lea.vmem [#allocation3], %s348
        // Predicated region
        $region49: #{tpu_custom_call.1} parent=47 // pred_check
          %p350 = pneg %p59
        $region50: #{tpu_custom_call.1} parent=47 // pred_check_branch
          %352 = sbr.rel (%p350) target = $region52
        $region51: #{tpu_custom_call.1} parent=47 // pred_region
          %354 = dma.done %s346, 128
        $region52: #{tpu_custom_call.1} parent=47 // pred_fallthru
          _
        // Predicated region
        $region53: #{tpu_custom_call.1} parent=47 // pred_check
          %p355 = pneg %p85
        $region54: #{tpu_custom_call.1} parent=47 // pred_check_branch
          %357 = sbr.rel (%p355) target = $region56
        $region55: #{tpu_custom_call.1} parent=47 // pred_region
          %359 = dma.done [#allocation7], 512
        $region56: #{tpu_custom_call.1} parent=47 // pred_fallthru
          _
        // Predicated region
        $region57: #{tpu_custom_call.1} parent=47 // pred_check
          %p360 = pneg %p111
        $region58: #{tpu_custom_call.1} parent=47 // pred_check_branch
          %362 = sbr.rel (%p360) target = $region60
        $region59: #{tpu_custom_call.1} parent=47 // pred_region
          %364 = dma.done [#allocation7], 512
        $region60: #{tpu_custom_call.1} parent=47 // pred_fallthru
          _
        // Predicated region
        $region61: #{tpu_custom_call.1} parent=47 // pred_check
          %p365 = pneg %p189
        $region62: #{tpu_custom_call.1} parent=47 // pred_check_branch
          %367 = sbr.rel (%p365) target = $region64
        $region63: #{tpu_custom_call.1} parent=47 // pred_region
          %369 = dma.done [#allocation10], 2048
        $region64: #{tpu_custom_call.1} parent=47 // pred_fallthru
          _
        %s370 = sand.u32 %s46, 1
        %s371 = scalar_lea.sflag [#allocation4], %s370
        %s372 = sand.u32 %s46, 1
        %s373 = smul.addr %s372, 8
        %s374 = scalar_lea.vmem [#allocation3], %s373
        %p375 = pneg %p59
        %p376 = pneg %p56
        %p377 = pneg %p85
        %p378 = pneg %p82
        %p379 = pneg %p111
        %p380 = pneg %p108
        %p381 = scmp.lt.s32.totalorder %s31, 0
        %s382 = scalar_select %p381, %s31, 0
        %s383 = scalar_lea.vmem %s3, %s382
        %p384 = pneg %p137
        %p385 = pneg %p134
        %p386 = scmp.lt.s32.totalorder %s31, 0
        %s387 = scalar_select %p386, %s31, 0
        %s388 = scalar_lea.vmem %s4, %s387
        %p389 = pneg %p163
        %p390 = pneg %p160
        %p391 = pneg %p189
        %p392 = pneg %p186
        %p393 = pneg %p210
        %p394 = pneg %p207
        %p395 = pneg %p236
        %p396 = pneg %p233
        %s397 = sand.u32 %s223, 1
        %s398 = scalar_lea.sflag [#allocation5], %s397
        %s399 = sand.u32 %s223, 1
        %s400 = smul.addr %s399, 8
        %s401 = scalar_lea.vmem [#allocation11], %s400
        %p402 = scmp.lt.s32.totalorder %s31, 0
        %s403 = scalar_select %p402, %s31, 0
        %s404 = scalar_lea.vmem %s3, %s403
        %p405 = scmp.lt.s32.totalorder %s31, 0
        %s406 = scalar_select %p405, %s31, 0
        %s407 = scalar_lea.vmem %s4, %s406
        %s408 = smul.u32 16, %s31
        %p409 = scmp.eq.s32.totalorder %s31, 0
        // Predicated region
        $region65: #{tpu_custom_call.1} parent=47 // pred_check
          %p410 = pneg %p409
        $region66: #{tpu_custom_call.1} parent=47 // pred_check_branch
          %412 = sbr.rel (%p410) target = $region68
        $region67: #{tpu_custom_call.1} parent=47 // pred_region
          %413 = vst [vmem:[#allocation2] sm:$0xff] 0.0
        $region68: #{tpu_custom_call.1} parent=47 // pred_fallthru
          _
        %v414 = vld [vmem:[%s349] sm:$0xff]
        %v415 = vld [vmem:[#allocation6] sm:$0xff]
        %v416 = vld [vmem:[#allocation6 + $0x8] sm:$0xff]
        %v417 = vld [vmem:[#allocation6 + $0x10] sm:$0xff]
        %v418 = vld [vmem:[#allocation6 + $0x18] sm:$0xff]
        %v419 = vld [vmem:[%s404] sm:$0x1]
        %v421 = vperm.slane %v419, 0
        %vm423 = vcmask 261120
        %v425 = vsel %vm423, %v414, 0
        %427 = vmatpush.msra.mxu0 0.0
        %428 = vmatpush.msra.mxu0 0.0
        %429 = vmatpush.msra.mxu0 0.0
        %430 = vmatpush.msra.mxu0 0.0
        %431 = vmatpush.msra.mxu0 0.0
        %432 = vmatpush.msra.mxu0 0.0
        %433 = vmatpush.msra.mxu0 0.0
        %434 = vmatpush.msra.mxu0 0.0
        %435 = vmatpush.msra.mxu0 0.0
        %436 = vmatpush.msra.mxu0 0.0
        %437 = vmatpush.msra.mxu0 0.0
        %438 = vmatpush.msra.mxu0 0.0
        %439 = vmatpush.msra.mxu0 %v418
        %440 = vmatpush.msra.mxu0 %v417
        %441 = vmatpush.msra.mxu0 %v416
        %442 = vmatpush.msra.mxu0 %v415
        %443 = vmatmul.f32.gmra.mxu0 %v425
        %v444 = vpop.f32.mrf.mxu0
        %v445 = vadd.f32 %v421, %v444
        %446 = vdwg.mxu0
        %v447 = vld [vmem:[#allocation8] sm:$0xff]
        %v448 = vld [vmem:[#allocation8 + $0x8] sm:$0xff]
        %v449 = vld [vmem:[#allocation8 + $0x10] sm:$0xff]
        %v450 = vld [vmem:[#allocation8 + $0x18] sm:$0xff]
        %v451 = vld [vmem:[%s407] sm:$0x1]
        %v453 = vperm.slane %v451, 0
        %455 = vmatpush.msra.mxu0 0.0
        %456 = vmatpush.msra.mxu0 0.0
        %457 = vmatpush.msra.mxu0 0.0
        %458 = vmatpush.msra.mxu0 0.0
        %459 = vmatpush.msra.mxu0 0.0
        %460 = vmatpush.msra.mxu0 0.0
        %461 = vmatpush.msra.mxu0 0.0
        %462 = vmatpush.msra.mxu0 0.0
        %463 = vmatpush.msra.mxu0 0.0
        %464 = vmatpush.msra.mxu0 0.0
        %465 = vmatpush.msra.mxu0 0.0
        %466 = vmatpush.msra.mxu0 0.0
        %467 = vmatpush.msra.mxu0 %v450
        %468 = vmatpush.msra.mxu0 %v449
        %469 = vmatpush.msra.mxu0 %v448
        %470 = vmatpush.msra.mxu0 %v447
        %471 = vmatmul.f32.gmra.mxu0 %v425
        %v472 = vpop.f32.mrf.mxu0
        %v473 = vadd.f32 %v453, %v472
        %474 = vdwg.mxu0
        %v475 = vxor.u32 %v473, 2147483648
        %v476 = vmul.f32 %v475, 1.442695
        %v477 = vpow.pop %v476
        %v478 = vadd.f32 %v477, 1.0
        %v479 = vrcp.pop %v478
        %v480 = vmul.f32 %v478, %v479
        %v481 = vsub.f32 1.0, %v480
        %v482 = vmul.f32 %v479, %v481
        %v483 = vadd.f32 %v479, %v482
        %vm484 = vweird.f32 %v478
        %vm485 = vweird.f32 %v479
        %vm486 = vmor %vm484, %vm485
        %v487 = vsel %vm486, %v479, %v483
        %v488 = vand.u32 2147483647, %v478
        %vm489 = vcmp.eq.f32.partialorder %v488, 8.507059e+37
        %v490 = vand.u32 %v478, 2147483648
        %v491 = vor.u32 1.1754944e-38, %v490
        %v492 = vsel %vm489, %v491, %v487
        %v493 = vmul.f32 1.0, %v492
        %v494 = vmul.f32 %v473, %v493
        %v495 = vmul.f32 %v445, %v494
        %v496 = vld [vmem:[#allocation2] sm:$0xff]
        %v497 = vld [vmem:[#allocation9] sm:$0xff]
        %v498 = vld [vmem:[#allocation9 + $0x8] sm:$0xff]
        %v499 = vld [vmem:[#allocation9 + $0x10] sm:$0xff]
        %v500 = vld [vmem:[#allocation9 + $0x18] sm:$0xff]
        %v501 = vld [vmem:[#allocation9 + $0x20] sm:$0xff]
        %v502 = vld [vmem:[#allocation9 + $0x28] sm:$0xff]
        %v503 = vld [vmem:[#allocation9 + $0x30] sm:$0xff]
        %v504 = vld [vmem:[#allocation9 + $0x38] sm:$0xff]
        %v505 = vld [vmem:[#allocation9 + $0x40] sm:$0xff]
        %v506 = vld [vmem:[#allocation9 + $0x48] sm:$0xff]
        %v507 = vld [vmem:[#allocation9 + $0x50] sm:$0xff]
        %v508 = vld [vmem:[#allocation9 + $0x58] sm:$0xff]
        %v509 = vld [vmem:[#allocation9 + $0x60] sm:$0xff]
        %v510 = vld [vmem:[#allocation9 + $0x68] sm:$0xff]
        %v511 = vld [vmem:[#allocation9 + $0x70] sm:$0xff]
        %v512 = vld [vmem:[#allocation9 + $0x78] sm:$0xff]
        %513 = vmatpush.msra.mxu0 %v512
        %514 = vmatpush.msra.mxu0 %v511
        %515 = vmatpush.msra.mxu0 %v510
        %516 = vmatpush.msra.mxu0 %v509
        %517 = vmatpush.msra.mxu0 %v508
        %518 = vmatpush.msra.mxu0 %v507
        %519 = vmatpush.msra.mxu0 %v506
        %520 = vmatpush.msra.mxu0 %v505
        %521 = vmatpush.msra.mxu0 %v504
        %522 = vmatpush.msra.mxu0 %v503
        %523 = vmatpush.msra.mxu0 %v502
        %524 = vmatpush.msra.mxu0 %v501
        %525 = vmatpush.msra.mxu0 %v500
        %526 = vmatpush.msra.mxu0 %v499
        %527 = vmatpush.msra.mxu0 %v498
        %528 = vmatpush.msra.mxu0 %v497
        %529 = vmatmul.f32.gmra.mxu0 %v495
        %v530 = vpop.f32.mrf.mxu0
        %v531 = vadd.f32 0.0, %v530
        %532 = vdwg.mxu0
        %v533 = vadd.f32 %v496, %v531
        %534 = vst [vmem:[#allocation2] sm:$0xff] %v533
        // Predicated region
        $region69: #{tpu_custom_call.1} parent=47 // pred_check
          %p535 = pneg %p409
        $region70: #{tpu_custom_call.1} parent=47 // pred_check_branch
          %537 = sbr.rel (%p535) target = $region72
        $region71: #{tpu_custom_call.1} parent=47 // pred_region
          %v538 = vld [vmem:[#allocation2] sm:$0xff]
          %v539 = vld [vmem:[%s6] sm:$0x1]
          %v541 = vperm.slane %v539, 0
          %v543 = vadd.f32 %v538, %v541
          %544 = vst [vmem:[%s401] sm:$0xff] %v543
        $region72: #{tpu_custom_call.1} parent=47 // pred_fallthru
          _
        %s545 = sand.u32 %s223, 1
        %s546 = scalar_lea.sflag [#allocation5], %s545
        %s547 = sand.u32 %s223, 1
        %s548 = smul.addr %s547, 8
        %s549 = scalar_lea.vmem [#allocation11], %s548
        // Predicated region
        $region73: #{tpu_custom_call.1} parent=47 // pred_check
          %p550 = pneg %p233
        $region74: #{tpu_custom_call.1} parent=47 // pred_check_branch
          %552 = sbr.rel (%p550) target = $region76
        $region75: #{tpu_custom_call.1} parent=47 // pred_region
          %554 = vsyncadd %s546, 0
          %s555 = smul.addr %s30, 8
          %s556 = scalar_lea.hbm %s7, %s555
          %s558 = sshll.u32 %s549, 4
          %s559 = int_to_ptr.vmem [resolvable:$true] %s558
          %s560 = sshll.u32 %s556, 4
          %s561 = int_to_ptr.hbm [resolvable:$true] %s560
          %563 = dma.vmem_to_hbm [thread:$0]  %s559, 128, %s561, %s546
        $region76: #{tpu_custom_call.1} parent=47 // pred_fallthru
          _
      $region48: #{tpu_custom_call.1} parent=5 // pred_fallthru
        _
      %p564 = scmp.le.s32.totalorder 2, %s21
      // Predicated region
      $region77: #{tpu_custom_call.1} parent=5 // pred_check
        %p565 = pneg %p564
      $region78: #{tpu_custom_call.1} parent=5 // pred_check_branch
        %567 = sbr.rel (%p565) target = $region80
      $region79: #{tpu_custom_call.1} parent=5 // pred_region
        %s568 = ssub.s32 %s21, 2
        // Predicated region
        $region81: #{tpu_custom_call.1} parent=79 // pred_check
          %p569 = pneg %p239
        $region82: #{tpu_custom_call.1} parent=79 // pred_check_branch
          %571 = sbr.rel (%p569) target = $region84
        $region83: #{tpu_custom_call.1} parent=79 // pred_region
          %s572 = sand.u32 %s224, 1
          %s573 = scalar_lea.sflag [#allocation5], %s572
          %s574 = sand.u32 %s224, 1
          %s575 = smul.addr %s574, 8
          %s576 = scalar_lea.vmem [#allocation11], %s575
          %578 = dma.done %s573, 128
        $region84: #{tpu_custom_call.1} parent=79 // pred_fallthru
          _
      $region80: #{tpu_custom_call.1} parent=5 // pred_fallthru
        _
    $region6: #{tpu_custom_call.1} parent=1 // loop_footer
      %s25 = sadd.s32 1, %s21
    $region7: #{tpu_custom_call.1} parent=1 // loop_footer_branch
      %20 = sbr.rel target = $region3
    $region8: #{tpu_custom_call.1} parent=1 // loop_exit
      _
    %579 = vsyncpa [#allocation4], 1
    %s580 = scalar_lea.sflag [#allocation4], 1
    %581 = vsyncpa %s580, 1
    %582 = vsyncpa [#allocation7], 1
    %583 = vsyncpa [#allocation10], 1
    %584 = vsyncpa [#allocation5], 1
    %s585 = scalar_lea.sflag [#allocation5], 1
    %586 = vsyncpa %s585, 1

</llo_original>
